<compile_context>
chip_gen: v7x
topology: tpu7x:2x2x1
jax: 0.10.0
libtpu: 0.0.40
codegen_flags: <defaults>
</compile_context>

<pallas_src>
import functools

import jax
import jax.numpy as jnp
from jax.experimental import pallas as pl
from jax.experimental.pallas import tpu as pltpu

_BN_EPS = 1e-5
_F = 128           # lane-aligned front offset for band storage in the scratch planes


# ----------------------------------------------------------------------------
# Fused kernel: deconv(phase) -> conv3x3+BN+ReLU6(phase) -> conv3x3+BN(phase)
# ----------------------------------------------------------------------------
def _unet_block_kernel(x_ref, wt_ref, bt_ref, w1_ref, b1_ref, w2_ref, b2_ref,
                       mask_ref, o_ref, x4_ref, y_ref, y4_ref, z_ref, z4_ref,
                       *, H, W, cin, cout):
    """One grid step == one image.

    x_ref  : (1, cin, Lg)       bf16  zero-padded input, flattened (Hp*Wp)
    wt_ref : (4, cin, 4*cin)    bf16  deconv weights, taps stacked along K
    w1_ref : (4, cin, 16*cin)   bf16  conv1 weights (BN folded), taps stacked
    w2_ref : (4, cout, 16*cin)  bf16  conv2 weights (BN folded), taps stacked
    bt/b1/b2: (c, 1)            f32   bias / BN shift
    mask   : (1, M)             f32   zeros on the 2 wrap-around cols per row
    o_ref  : (1, 4, cout, M)    bf16  phase-decomposed output bands
    x4/y4/z4, y/z : VMEM scratch (4-shift stacks / packed phase planes)
    """
    Wp = W + 2
    M = H * Wp                       # flat band length of one phase plane
    Lg = (H + 2) * Wp                # flat length of the zero-padded input grid
    F = _F                           # aligned offset of the stored bands
    G = F - (Wp + 1)                 # base lane offset of the stacked-slice reads
    SH = (0, 1, Wp, Wp + 1)          # the 4 sub-pixel shifts (shift-group order)
    HB = M + Wp + 1                  # copied width when building the 4-shift stacks

    mask = mask_ref[...]                                      # (1, M) f32
    # Hoisted bias broadcasts (JAX does not CSE broadcast_in_dim).
    btb = jnp.broadcast_to(bt_ref[...], (cin, M))
    b1b = jnp.broadcast_to(b1_ref[...], (cin, M))
    b2b = jnp.broadcast_to(b2_ref[...], (cout, M))

    # ---- build the 4-shift stacked input plane X4 ---------------------------
    # X4[s*cin + ci, i] = x_padded_flat[ci, i - (F+1) + SH[s]]   (zero elsewhere)
    x4_ref[...] = jnp.zeros(x4_ref.shape, x4_ref.dtype)
    xin = x_ref[0]                                            # (cin, Lg)
    for s, sh in enumerate(SH):
        x4_ref[pl.ds(s * cin, cin), pl.ds(F + 1 - sh, Lg)] = xin

    # ---- stage 1: ConvTranspose2d(cin, cin, k=4, s=2, p=1) + bias -----------
    # Sub-pixel decomposition: one (cin, 4cin) x (4cin, M) matmul per output phase.
    zpad = jnp.zeros((4 * cin, F), y_ref.dtype)
    y_ref[:, pl.ds(0, F)] = zpad
    y_ref[:, pl.ds(F + M, F)] = zpad
    for q in range(4):                        # q = 2*ph + pw  (row/col parity)
        ph, pw = q // 2, q % 2
        rhs = x4_ref[:, pl.ds(F + ph * Wp + pw, M)]           # (4cin, M)
        acc = jnp.dot(wt_ref[q], rhs, preferred_element_type=jnp.float32)
        band = (acc + btb) * mask
        y_ref[pl.ds(q * cin, cin), pl.ds(F, M)] = band.astype(y_ref.dtype)

    # ---- build the 4-shift stacked packed plane Y4 --------------------------
    for s, sh in enumerate(SH):
        y4_ref[pl.ds(s * 4 * cin, 4 * cin), pl.ds(G, HB)] = \
            y_ref[:, pl.ds(G + sh, HB)]

    # ---- stage 2: Conv3x3(cin->cin) + BN + ReLU6, one matmul per phase ------
    z_ref[:, pl.ds(0, F)] = zpad
    z_ref[:, pl.ds(F + M, F)] = zpad
    for q in range(4):
        qh, qw = q // 2, q % 2
        rhs = y4_ref[:, pl.ds(G + qh * Wp + qw, M)]           # (16cin, M)
        acc = jnp.dot(w1_ref[q], rhs, preferred_element_type=jnp.float32)
        band = jnp.clip(acc + b1b, 0.0, 6.0) * mask
        z_ref[pl.ds(q * cin, cin), pl.ds(F, M)] = band.astype(z_ref.dtype)

    # ---- build Z4 ------------------------------------------------------------
    for s, sh in enumerate(SH):
        z4_ref[pl.ds(s * 4 * cin, 4 * cin), pl.ds(G, HB)] = \
            z_ref[:, pl.ds(G + sh, HB)]

    # ---- stage 3: Conv3x3(cin->cout) + BN, one matmul per phase -------------
    for q in range(4):
        qh, qw = q // 2, q % 2
        rhs = z4_ref[:, pl.ds(G + qh * Wp + qw, M)]
        acc = jnp.dot(w2_ref[q], rhs, preferred_element_type=jnp.float32)
        o_ref[0, q, :, :] = ((acc + b2b) * mask).astype(o_ref.dtype)


# ----------------------------------------------------------------------------
# Wrapper: parameter packing (BN fold, tap stacking), pallas_call, re-interleave
# ----------------------------------------------------------------------------
def _fold_bn(gamma, beta, mean, var):
    s = gamma / jnp.sqrt(var + _BN_EPS)
    return s, beta - mean * s


def _stack_deconv_weights(wt):
    """(ci, co, 4, 4) -> (4 phases, co, 4*ci): deconv taps stacked along K."""
    mats = []
    for ph in range(2):
        for pw in range(2):
            taps = [jnp.transpose(wt[:, :, 3 - ph - 2 * a, 3 - pw - 2 * b])
                    for a in range(2) for b in range(2)]       # s = 2a + b
            mats.append(jnp.concatenate(taps, axis=1))          # (co, 4*ci)
    return jnp.stack(mats)


def _stack_conv3_weights(w, scale):
    """(co, ci, 3, 3) * scale[co] -> (4 phases, co, 16*ci): each 3x3 tap is
    scattered into its (shift-group s, source-plane p) slot of the 4-shift stack;
    unused slots keep zero weights."""
    co, ci = w.shape[0], w.shape[1]
    ws = w * scale[:, None, None, None]
    mats = []
    for qh in range(2):
        for qw in range(2):
            m = jnp.zeros((co, 4, 4, ci), ws.dtype)             # [co, s, p, ci]
            for dh in range(3):
                ph = (qh + dh + 1) % 2
                a = (qh + dh - 1) // 2 + 1 - qh
                for dw in range(3):
                    pw = (qw + dw + 1) % 2
                    b = (qw + dw - 1) // 2 + 1 - qw
                    m = m.at[:, 2 * a + b, 2 * ph + pw, :].set(ws[:, :, dh, dw])
            mats.append(m.reshape(co, 16 * ci))
    return jnp.stack(mats)


def unet_block_forward(x_nchw, p):
    """Exact forward of UNetBlock (eval-mode BN). x_nchw: (N, cin, H, W) f32."""
    N, cin, H, W = x_nchw.shape
    cout = p["w2"].shape[0]
    Hp, Wp = H + 2, W + 2
    M = H * Wp
    Lg = Hp * Wp
    F = _F
    assert Wp + 1 <= F, "flat-plane layout needs W + 3 <= 128 (use (C*Hp, Wp) layout otherwise)"

    LX = -(-(F + 1 + Lg) // 128) * 128   # 4-shift stacked input plane
    LY = 2 * F + M                       # packed phase planes (y, z)
    LQ = F + M                           # 4-shift stacked y / z planes

    # input: zero-pad spatially by 1, flatten, cast to bf16.
    # TODO(synk): for large inputs move this pad/cast in-kernel to save one HBM pass.
    xf = jnp.pad(x_nchw, ((0, 0), (0, 0), (1, 1), (1, 1)))
    xf = xf.reshape(N, cin, Lg).astype(jnp.bfloat16)

    wt_stk = _stack_deconv_weights(p["wt"]).astype(jnp.bfloat16)      # (4, cin, 4cin)
    bt = p["bt"].reshape(cin, 1).astype(jnp.float32)

    s1, sh1 = _fold_bn(p["g1"], p["b1"], p["m1"], p["v1"])
    w1_stk = _stack_conv3_weights(p["w1"], s1).astype(jnp.bfloat16)   # (4, cin, 16cin)
    b1 = sh1.reshape(cin, 1).astype(jnp.float32)

    s2, sh2 = _fold_bn(p["g2"], p["b2"], p["m2"], p["v2"])
    w2_stk = _stack_conv3_weights(p["w2"], s2).astype(jnp.bfloat16)   # (4, cout, 16cin)
    b2 = sh2.reshape(cout, 1).astype(jnp.float32)

    # mask zeroing the two wrap-around columns of each flattened band row
    col = jnp.arange(M, dtype=jnp.int32) % Wp
    mask = ((col > 0) & (col < Wp - 1)).astype(jnp.float32).reshape(1, M)

    kernel = functools.partial(_unet_block_kernel, H=H, W=W, cin=cin, cout=cout)
    out = pl.pallas_call(
        kernel,
        out_shape=jax.ShapeDtypeStruct((N, 4, cout, M), jnp.bfloat16),
        grid_spec=pltpu.PrefetchScalarGridSpec(
            num_scalar_prefetch=0,
            grid=(N,),
            in_specs=[
                pl.BlockSpec((1, cin, Lg), lambda n: (n, 0, 0)),
                pl.BlockSpec((4, cin, 4 * cin), lambda n: (0, 0, 0)),
                pl.BlockSpec((cin, 1), lambda n: (0, 0)),
                pl.BlockSpec((4, cin, 16 * cin), lambda n: (0, 0, 0)),
                pl.BlockSpec((cin, 1), lambda n: (0, 0)),
                pl.BlockSpec((4, cout, 16 * cin), lambda n: (0, 0, 0)),
                pl.BlockSpec((cout, 1), lambda n: (0, 0)),
                pl.BlockSpec((1, M), lambda n: (0, 0)),
            ],
            out_specs=pl.BlockSpec((1, 4, cout, M), lambda n: (n, 0, 0, 0)),
            scratch_shapes=[
                pltpu.VMEM((4 * cin, LX), jnp.bfloat16),    # x4: 4-shift stacked input
                pltpu.VMEM((4 * cin, LY), jnp.bfloat16),    # y : packed deconv phases
                pltpu.VMEM((16 * cin, LQ), jnp.bfloat16),   # y4: 4-shift stacked y
                pltpu.VMEM((4 * cin, LY), jnp.bfloat16),    # z : packed conv1 phases
                pltpu.VMEM((16 * cin, LQ), jnp.bfloat16),   # z4: 4-shift stacked z
            ],
        ),
        compiler_params=pltpu.CompilerParams(
            dimension_semantics=("parallel",)),
    )(xf, wt_stk, bt, w1_stk, b1, w2_stk, b2, mask)

    # phases -> interleaved NCHW (bf16), dropping the 2 wrap-around cols per row
    out = out.reshape(N, 2, 2, cout, H, Wp)[..., 1:W + 1]     # [n, qh, qw, co, u, v]
    out = out.transpose(0, 3, 4, 1, 5, 2).reshape(N, cout, 2 * H, 2 * W)
    return out


# ----------------------------------------------------------------------------
# Deterministic parameter init (shapes follow the nn.Module __init__)
# ----------------------------------------------------------------------------
def init_params(key, cin, cout):
    ks = jax.random.split(key, 6)
    return {
        # ConvTranspose2d(cin, cin, 4): weight (cin, cin, 4, 4), bias (cin,)
        "wt": 0.1 * jax.random.normal(ks[0], (cin, cin, 4, 4), jnp.float32),
        "bt": 0.05 * jax.random.normal(ks[1], (cin,), jnp.float32),
        # Conv2d(cin, cin, 3): (cin, cin, 3, 3)
        "w1": 0.1 * jax.random.normal(ks[2], (cin, cin, 3, 3), jnp.float32),
        # BN(cin)
        "g1": 1.0 + 0.1 * jax.random.normal(ks[3], (cin,), jnp.float32),
        "b1": jnp.linspace(-0.1, 0.1, cin, dtype=jnp.float32),
        "m1": jnp.linspace(-0.05, 0.05, cin, dtype=jnp.float32),
        "v1": jnp.linspace(0.9, 1.1, cin, dtype=jnp.float32),
        # Conv2d(cin, cout, 3): (cout, cin, 3, 3)
        "w2": 0.1 * jax.random.normal(ks[4], (cout, cin, 3, 3), jnp.float32),
        # BN(cout)
        "g2": 1.0 + 0.1 * jax.random.normal(ks[5], (cout,), jnp.float32),
        "b2": jnp.linspace(-0.1, 0.1, cout, dtype=jnp.float32),
        "m2": jnp.linspace(-0.05, 0.05, cout, dtype=jnp.float32),
        "v2": jnp.linspace(0.9, 1.1, cout, dtype=jnp.float32),
    }


if __name__ == "__main__":
    key = jax.random.PRNGKey(0)
    k_x, k_p = jax.random.split(key)

    batch, cin, cout, H, W = 2, 4, 8, 16, 16
    x = jax.random.normal(k_x, (batch, cin, H, W), jnp.float32)
    params = init_params(k_p, cin, cout)

    fwd = jax.jit(unet_block_forward)
    out = fwd(x, params)
    out = jax.block_until_ready(out)

    assert out.shape == (batch, cout, 2 * H, 2 * W), out.shape
    assert jnp.all(jnp.isfinite(out.astype(jnp.float32)))
    print("KERNEL_OK")
</pallas_src>

<mosaic_0001>
module attributes {stable_mosaic.version = 11 : i64} {
  func.func @_unet_block_kernel(%arg0: i32, %arg1: memref<1x4x324xbf16, #tpu.memory_space<vmem>>, %arg2: memref<4x4x16xbf16, #tpu.memory_space<vmem>>, %arg3: memref<4x1xf32, #tpu.memory_space<vmem>>, %arg4: memref<4x4x64xbf16, #tpu.memory_space<vmem>>, %arg5: memref<4x1xf32, #tpu.memory_space<vmem>>, %arg6: memref<4x8x64xbf16, #tpu.memory_space<vmem>>, %arg7: memref<8x1xf32, #tpu.memory_space<vmem>>, %arg8: memref<1x288xf32, #tpu.memory_space<vmem>>, %arg9: memref<1x4x8x288xbf16, #tpu.memory_space<vmem>>, %arg10: memref<16x512xbf16, #tpu.memory_space<vmem>>, %arg11: memref<16x544xbf16, #tpu.memory_space<vmem>>, %arg12: memref<64x416xbf16, #tpu.memory_space<vmem>>, %arg13: memref<16x544xbf16, #tpu.memory_space<vmem>>, %arg14: memref<64x416xbf16, #tpu.memory_space<vmem>>) attributes {dimension_semantics = [#tpu.dimension_semantics<parallel>], iteration_bounds = array<i64: 2>, scalar_prefetch = 0 : i64, scratch_operands = 5 : i64, tpu.core_type = #tpu.core_type<tc>, window_params = [{transform_indices = @transform_0, window_bounds = array<i64: 1, 4, 324>}, {pipeline_mode = #tpu.pipeline_mode<synchronous>, transform_indices = @transform_1, window_bounds = array<i64: 4, 4, 16>}, {pipeline_mode = #tpu.pipeline_mode<synchronous>, transform_indices = @transform_2, window_bounds = array<i64: 4, 1>}, {pipeline_mode = #tpu.pipeline_mode<synchronous>, transform_indices = @transform_3, window_bounds = array<i64: 4, 4, 64>}, {pipeline_mode = #tpu.pipeline_mode<synchronous>, transform_indices = @transform_4, window_bounds = array<i64: 4, 1>}, {pipeline_mode = #tpu.pipeline_mode<synchronous>, transform_indices = @transform_5, window_bounds = array<i64: 4, 8, 64>}, {pipeline_mode = #tpu.pipeline_mode<synchronous>, transform_indices = @transform_6, window_bounds = array<i64: 8, 1>}, {pipeline_mode = #tpu.pipeline_mode<synchronous>, transform_indices = @transform_7, window_bounds = array<i64: 1, 288>}, {transform_indices = @transform_8, window_bounds = array<i64: 1, 4, 8, 288>}]} {
    %c0 = arith.constant 0 : index
    %c0_0 = arith.constant 0 : index
    %0 = vector.load %arg8[%c0, %c0_0] : memref<1x288xf32, #tpu.memory_space<vmem>>, vector<1x288xf32>
    %c0_1 = arith.constant 0 : index
    %c0_2 = arith.constant 0 : index
    %1 = vector.load %arg3[%c0_1, %c0_2] : memref<4x1xf32, #tpu.memory_space<vmem>>, vector<4x1xf32>
    %2 = vector.shape_cast %1 : vector<4x1xf32> to vector<4x1xf32>
    %3 = vector.broadcast %2 : vector<4x1xf32> to vector<4x288xf32>
    %c0_3 = arith.constant 0 : index
    %c0_4 = arith.constant 0 : index
    %4 = vector.load %arg5[%c0_3, %c0_4] : memref<4x1xf32, #tpu.memory_space<vmem>>, vector<4x1xf32>
    %5 = vector.shape_cast %4 : vector<4x1xf32> to vector<4x1xf32>
    %6 = vector.broadcast %5 : vector<4x1xf32> to vector<4x288xf32>
    %c0_5 = arith.constant 0 : index
    %c0_6 = arith.constant 0 : index
    %7 = vector.load %arg7[%c0_5, %c0_6] : memref<8x1xf32, #tpu.memory_space<vmem>>, vector<8x1xf32>
    %8 = vector.shape_cast %7 : vector<8x1xf32> to vector<8x1xf32>
    %9 = vector.broadcast %8 : vector<8x1xf32> to vector<8x288xf32>
    %cst = arith.constant 0.000000e+00 : bf16
    %10 = vector.broadcast %cst : bf16 to vector<16x512xbf16>
    %c0_7 = arith.constant 0 : index
    %c0_8 = arith.constant 0 : index
    %11 = vector.load %arg10[%c0_7, %c0_8] : memref<16x512xbf16, #tpu.memory_space<vmem>>, vector<16x512xbf16>
    tpu.vector_store %arg10[%c0_7, %c0_8], %10 {strides = array<i32>} : memref<16x512xbf16, #tpu.memory_space<vmem>>, vector<16x512xbf16>,
    %c0_9 = arith.constant 0 : index
    %c0_10 = arith.constant 0 : index
    %c0_11 = arith.constant 0 : index
    %12 = vector.load %arg1[%c0_9, %c0_10, %c0_11] : memref<1x4x324xbf16, #tpu.memory_space<vmem>>, vector<1x4x324xbf16>
    %13 = vector.shape_cast %12 : vector<1x4x324xbf16> to vector<4x324xbf16>
    %c0_12 = arith.constant 0 : index
    %c129 = arith.constant 129 : index
    %14 = vector.load %arg10[%c0_12, %c129] : memref<16x512xbf16, #tpu.memory_space<vmem>>, vector<4x324xbf16>
    tpu.vector_store %arg10[%c0_12, %c129], %13 {strides = array<i32>} : memref<16x512xbf16, #tpu.memory_space<vmem>>, vector<4x324xbf16>,
    %c4 = arith.constant 4 : index
    %c128 = arith.constant 128 : index
    %15 = vector.load %arg10[%c4, %c128] : memref<16x512xbf16, #tpu.memory_space<vmem>>, vector<4x324xbf16>
    tpu.vector_store %arg10[%c4, %c128], %13 {strides = array<i32>} : memref<16x512xbf16, #tpu.memory_space<vmem>>, vector<4x324xbf16>,
    %c8 = arith.constant 8 : index
    %c111 = arith.constant 111 : index
    %16 = vector.load %arg10[%c8, %c111] : memref<16x512xbf16, #tpu.memory_space<vmem>>, vector<4x324xbf16>
    tpu.vector_store %arg10[%c8, %c111], %13 {strides = array<i32>} : memref<16x512xbf16, #tpu.memory_space<vmem>>, vector<4x324xbf16>,
    %c12 = arith.constant 12 : index
    %c110 = arith.constant 110 : index
    %17 = vector.load %arg10[%c12, %c110] : memref<16x512xbf16, #tpu.memory_space<vmem>>, vector<4x324xbf16>
    tpu.vector_store %arg10[%c12, %c110], %13 {strides = array<i32>} : memref<16x512xbf16, #tpu.memory_space<vmem>>, vector<4x324xbf16>,
    %cst_13 = arith.constant 0.000000e+00 : bf16
    %18 = vector.broadcast %cst_13 : bf16 to vector<16x128xbf16>
    %c0_14 = arith.constant 0 : index
    %c0_15 = arith.constant 0 : index
    %19 = vector.load %arg11[%c0_14, %c0_15] : memref<16x544xbf16, #tpu.memory_space<vmem>>, vector<16x128xbf16>
    tpu.vector_store %arg11[%c0_14, %c0_15], %18 {strides = array<i32>} : memref<16x544xbf16, #tpu.memory_space<vmem>>, vector<16x128xbf16>,
    %c0_16 = arith.constant 0 : index
    %c416 = arith.constant 416 : index
    %20 = vector.load %arg11[%c0_16, %c416] : memref<16x544xbf16, #tpu.memory_space<vmem>>, vector<16x128xbf16>
    tpu.vector_store %arg11[%c0_16, %c416], %18 {strides = array<i32>} : memref<16x544xbf16, #tpu.memory_space<vmem>>, vector<16x128xbf16>,
    %c0_17 = arith.constant 0 : index
    %c128_18 = arith.constant 128 : index
    %21 = vector.load %arg10[%c0_17, %c128_18] : memref<16x512xbf16, #tpu.memory_space<vmem>>, vector<16x288xbf16>
    %c0_19 = arith.constant 0 : index
    %c0_20 = arith.constant 0 : index
    %c0_21 = arith.constant 0 : index
    %22 = vector.load %arg2[%c0_19, %c0_20, %c0_21] : memref<4x4x16xbf16, #tpu.memory_space<vmem>>, vector<1x4x16xbf16>
    %23 = vector.shape_cast %22 : vector<1x4x16xbf16> to vector<4x16xbf16>
    %cst_22 = arith.constant dense<0.000000e+00> : vector<4x288xf32>
    %24 = tpu.matmul %23, %21, %cst_22 {dimension_numbers = #tpu.dot_dimension_numbers<[1], [0], [0], [1], [0, 0, 1, 1], [], []>} : vector<4x16xbf16>, vector<16x288xbf16>, vector<4x288xf32> -> vector<4x288xf32>
    %25 = arith.addf %24, %3 : vector<4x288xf32>
    %26 = vector.broadcast %0 : vector<1x288xf32> to vector<4x288xf32>
    %27 = arith.mulf %25, %26 : vector<4x288xf32>
    %28 = arith.truncf %27 : vector<4x288xf32> to vector<4x288xbf16>
    %c0_23 = arith.constant 0 : index
    %c128_24 = arith.constant 128 : index
    %29 = vector.load %arg11[%c0_23, %c128_24] : memref<16x544xbf16, #tpu.memory_space<vmem>>, vector<4x288xbf16>
    tpu.vector_store %arg11[%c0_23, %c128_24], %28 {strides = array<i32>} : memref<16x544xbf16, #tpu.memory_space<vmem>>, vector<4x288xbf16>,
    %c0_25 = arith.constant 0 : index
    %c129_26 = arith.constant 129 : index
    %30 = vector.load %arg10[%c0_25, %c129_26] : memref<16x512xbf16, #tpu.memory_space<vmem>>, vector<16x288xbf16>
    %c1 = arith.constant 1 : index
    %c0_27 = arith.constant 0 : index
    %c0_28 = arith.constant 0 : index
    %31 = vector.load %arg2[%c1, %c0_27, %c0_28] : memref<4x4x16xbf16, #tpu.memory_space<vmem>>, vector<1x4x16xbf16>
    %32 = vector.shape_cast %31 : vector<1x4x16xbf16> to vector<4x16xbf16>
    %cst_29 = arith.constant dense<0.000000e+00> : vector<4x288xf32>
    %33 = tpu.matmul %32, %30, %cst_29 {dimension_numbers = #tpu.dot_dimension_numbers<[1], [0], [0], [1], [0, 0, 1, 1], [], []>} : vector<4x16xbf16>, vector<16x288xbf16>, vector<4x288xf32> -> vector<4x288xf32>
    %34 = arith.addf %33, %3 : vector<4x288xf32>
    %35 = vector.broadcast %0 : vector<1x288xf32> to vector<4x288xf32>
    %36 = arith.mulf %34, %35 : vector<4x288xf32>
    %37 = arith.truncf %36 : vector<4x288xf32> to vector<4x288xbf16>
    %c4_30 = arith.constant 4 : index
    %c128_31 = arith.constant 128 : index
    %38 = vector.load %arg11[%c4_30, %c128_31] : memref<16x544xbf16, #tpu.memory_space<vmem>>, vector<4x288xbf16>
    tpu.vector_store %arg11[%c4_30, %c128_31], %37 {strides = array<i32>} : memref<16x544xbf16, #tpu.memory_space<vmem>>, vector<4x288xbf16>,
    %c0_32 = arith.constant 0 : index
    %c146 = arith.constant 146 : index
    %39 = vector.load %arg10[%c0_32, %c146] : memref<16x512xbf16, #tpu.memory_space<vmem>>, vector<16x288xbf16>
    %c2 = arith.constant 2 : index
    %c0_33 = arith.constant 0 : index
    %c0_34 = arith.constant 0 : index
    %40 = vector.load %arg2[%c2, %c0_33, %c0_34] : memref<4x4x16xbf16, #tpu.memory_space<vmem>>, vector<1x4x16xbf16>
    %41 = vector.shape_cast %40 : vector<1x4x16xbf16> to vector<4x16xbf16>
    %cst_35 = arith.constant dense<0.000000e+00> : vector<4x288xf32>
    %42 = tpu.matmul %41, %39, %cst_35 {dimension_numbers = #tpu.dot_dimension_numbers<[1], [0], [0], [1], [0, 0, 1, 1], [], []>} : vector<4x16xbf16>, vector<16x288xbf16>, vector<4x288xf32> -> vector<4x288xf32>
    %43 = arith.addf %42, %3 : vector<4x288xf32>
    %44 = vector.broadcast %0 : vector<1x288xf32> to vector<4x288xf32>
    %45 = arith.mulf %43, %44 : vector<4x288xf32>
    %46 = arith.truncf %45 : vector<4x288xf32> to vector<4x288xbf16>
    %c8_36 = arith.constant 8 : index
    %c128_37 = arith.constant 128 : index
    %47 = vector.load %arg11[%c8_36, %c128_37] : memref<16x544xbf16, #tpu.memory_space<vmem>>, vector<4x288xbf16>
    tpu.vector_store %arg11[%c8_36, %c128_37], %46 {strides = array<i32>} : memref<16x544xbf16, #tpu.memory_space<vmem>>, vector<4x288xbf16>,
    %c0_38 = arith.constant 0 : index
    %c147 = arith.constant 147 : index
    %48 = vector.load %arg10[%c0_38, %c147] : memref<16x512xbf16, #tpu.memory_space<vmem>>, vector<16x288xbf16>
    %c3 = arith.constant 3 : index
    %c0_39 = arith.constant 0 : index
    %c0_40 = arith.constant 0 : index
    %49 = vector.load %arg2[%c3, %c0_39, %c0_40] : memref<4x4x16xbf16, #tpu.memory_space<vmem>>, vector<1x4x16xbf16>
    %50 = vector.shape_cast %49 : vector<1x4x16xbf16> to vector<4x16xbf16>
    %cst_41 = arith.constant dense<0.000000e+00> : vector<4x288xf32>
    %51 = tpu.matmul %50, %48, %cst_41 {dimension_numbers = #tpu.dot_dimension_numbers<[1], [0], [0], [1], [0, 0, 1, 1], [], []>} : vector<4x16xbf16>, vector<16x288xbf16>, vector<4x288xf32> -> vector<4x288xf32>
    %52 = arith.addf %51, %3 : vector<4x288xf32>
    %53 = vector.broadcast %0 : vector<1x288xf32> to vector<4x288xf32>
    %54 = arith.mulf %52, %53 : vector<4x288xf32>
    %55 = arith.truncf %54 : vector<4x288xf32> to vector<4x288xbf16>
    %c12_42 = arith.constant 12 : index
    %c128_43 = arith.constant 128 : index
    %56 = vector.load %arg11[%c12_42, %c128_43] : memref<16x544xbf16, #tpu.memory_space<vmem>>, vector<4x288xbf16>
    tpu.vector_store %arg11[%c12_42, %c128_43], %55 {strides = array<i32>} : memref<16x544xbf16, #tpu.memory_space<vmem>>, vector<4x288xbf16>,
    %c0_44 = arith.constant 0 : index
    %c109 = arith.constant 109 : index
    %57 = vector.load %arg11[%c0_44, %c109] : memref<16x544xbf16, #tpu.memory_space<vmem>>, vector<16x307xbf16>
    %c0_45 = arith.constant 0 : index
    %c109_46 = arith.constant 109 : index
    %58 = vector.load %arg12[%c0_45, %c109_46] : memref<64x416xbf16, #tpu.memory_space<vmem>>, vector<16x307xbf16>
    tpu.vector_store %arg12[%c0_45, %c109_46], %57 {strides = array<i32>} : memref<64x416xbf16, #tpu.memory_space<vmem>>, vector<16x307xbf16>,
    %c0_47 = arith.constant 0 : index
    %c110_48 = arith.constant 110 : index
    %59 = vector.load %arg11[%c0_47, %c110_48] : memref<16x544xbf16, #tpu.memory_space<vmem>>, vector<16x307xbf16>
    %c16 = arith.constant 16 : index
    %c109_49 = arith.constant 109 : index
    %60 = vector.load %arg12[%c16, %c109_49] : memref<64x416xbf16, #tpu.memory_space<vmem>>, vector<16x307xbf16>
    tpu.vector_store %arg12[%c16, %c109_49], %59 {strides = array<i32>} : memref<64x416xbf16, #tpu.memory_space<vmem>>, vector<16x307xbf16>,
    %c0_50 = arith.constant 0 : index
    %c127 = arith.constant 127 : index
    %61 = vector.load %arg11[%c0_50, %c127] : memref<16x544xbf16, #tpu.memory_space<vmem>>, vector<16x307xbf16>
    %c32 = arith.constant 32 : index
    %c109_51 = arith.constant 109 : index
    %62 = vector.load %arg12[%c32, %c109_51] : memref<64x416xbf16, #tpu.memory_space<vmem>>, vector<16x307xbf16>
    tpu.vector_store %arg12[%c32, %c109_51], %61 {strides = array<i32>} : memref<64x416xbf16, #tpu.memory_space<vmem>>, vector<16x307xbf16>,
    %c0_52 = arith.constant 0 : index
    %c128_53 = arith.constant 128 : index
    %63 = vector.load %arg11[%c0_52, %c128_53] : memref<16x544xbf16, #tpu.memory_space<vmem>>, vector<16x307xbf16>
    %c48 = arith.constant 48 : index
    %c109_54 = arith.constant 109 : index
    %64 = vector.load %arg12[%c48, %c109_54] : memref<64x416xbf16, #tpu.memory_space<vmem>>, vector<16x307xbf16>
    tpu.vector_store %arg12[%c48, %c109_54], %63 {strides = array<i32>} : memref<64x416xbf16, #tpu.memory_space<vmem>>, vector<16x307xbf16>,
    %c0_55 = arith.constant 0 : index
    %c0_56 = arith.constant 0 : index
    %65 = vector.load %arg13[%c0_55, %c0_56] : memref<16x544xbf16, #tpu.memory_space<vmem>>, vector<16x128xbf16>
    tpu.vector_store %arg13[%c0_55, %c0_56], %18 {strides = array<i32>} : memref<16x544xbf16, #tpu.memory_space<vmem>>, vector<16x128xbf16>,
    %c0_57 = arith.constant 0 : index
    %c416_58 = arith.constant 416 : index
    %66 = vector.load %arg13[%c0_57, %c416_58] : memref<16x544xbf16, #tpu.memory_space<vmem>>, vector<16x128xbf16>
    tpu.vector_store %arg13[%c0_57, %c416_58], %18 {strides = array<i32>} : memref<16x544xbf16, #tpu.memory_space<vmem>>, vector<16x128xbf16>,
    %c0_59 = arith.constant 0 : index
    %c109_60 = arith.constant 109 : index
    %67 = vector.load %arg12[%c0_59, %c109_60] : memref<64x416xbf16, #tpu.memory_space<vmem>>, vector<64x288xbf16>
    %c0_61 = arith.constant 0 : index
    %c0_62 = arith.constant 0 : index
    %c0_63 = arith.constant 0 : index
    %68 = vector.load %arg4[%c0_61, %c0_62, %c0_63] : memref<4x4x64xbf16, #tpu.memory_space<vmem>>, vector<1x4x64xbf16>
    %69 = vector.shape_cast %68 : vector<1x4x64xbf16> to vector<4x64xbf16>
    %cst_64 = arith.constant dense<0.000000e+00> : vector<4x288xf32>
    %70 = tpu.matmul %69, %67, %cst_64 {dimension_numbers = #tpu.dot_dimension_numbers<[1], [0], [0], [1], [0, 0, 1, 1], [], []>} : vector<4x64xbf16>, vector<64x288xbf16>, vector<4x288xf32> -> vector<4x288xf32>
    %71 = arith.addf %70, %6 : vector<4x288xf32>
    %cst_65 = arith.constant 0.000000e+00 : f32
    %cst_66 = arith.constant 6.000000e+00 : f32
    %72 = vector.broadcast %cst_65 : f32 to vector<4x288xf32>
    %73 = arith.maximumf %72, %71 : vector<4x288xf32>
    %74 = vector.broadcast %cst_66 : f32 to vector<4x288xf32>
    %75 = arith.minimumf %74, %73 : vector<4x288xf32>
    %76 = vector.broadcast %0 : vector<1x288xf32> to vector<4x288xf32>
    %77 = arith.mulf %75, %76 : vector<4x288xf32>
    %78 = arith.truncf %77 : vector<4x288xf32> to vector<4x288xbf16>
    %c0_67 = arith.constant 0 : index
    %c128_68 = arith.constant 128 : index
    %79 = vector.load %arg13[%c0_67, %c128_68] : memref<16x544xbf16, #tpu.memory_space<vmem>>, vector<4x288xbf16>
    tpu.vector_store %arg13[%c0_67, %c128_68], %78 {strides = array<i32>} : memref<16x544xbf16, #tpu.memory_space<vmem>>, vector<4x288xbf16>,
    %c0_69 = arith.constant 0 : index
    %c110_70 = arith.constant 110 : index
    %80 = vector.load %arg12[%c0_69, %c110_70] : memref<64x416xbf16, #tpu.memory_space<vmem>>, vector<64x288xbf16>
    %c1_71 = arith.constant 1 : index
    %c0_72 = arith.constant 0 : index
    %c0_73 = arith.constant 0 : index
    %81 = vector.load %arg4[%c1_71, %c0_72, %c0_73] : memref<4x4x64xbf16, #tpu.memory_space<vmem>>, vector<1x4x64xbf16>
    %82 = vector.shape_cast %81 : vector<1x4x64xbf16> to vector<4x64xbf16>
    %cst_74 = arith.constant dense<0.000000e+00> : vector<4x288xf32>
    %83 = tpu.matmul %82, %80, %cst_74 {dimension_numbers = #tpu.dot_dimension_numbers<[1], [0], [0], [1], [0, 0, 1, 1], [], []>} : vector<4x64xbf16>, vector<64x288xbf16>, vector<4x288xf32> -> vector<4x288xf32>
    %84 = arith.addf %83, %6 : vector<4x288xf32>
    %cst_75 = arith.constant 0.000000e+00 : f32
    %cst_76 = arith.constant 6.000000e+00 : f32
    %85 = vector.broadcast %cst_75 : f32 to vector<4x288xf32>
    %86 = arith.maximumf %85, %84 : vector<4x288xf32>
    %87 = vector.broadcast %cst_76 : f32 to vector<4x288xf32>
    %88 = arith.minimumf %87, %86 : vector<4x288xf32>
    %89 = vector.broadcast %0 : vector<1x288xf32> to vector<4x288xf32>
    %90 = arith.mulf %88, %89 : vector<4x288xf32>
    %91 = arith.truncf %90 : vector<4x288xf32> to vector<4x288xbf16>
    %c4_77 = arith.constant 4 : index
    %c128_78 = arith.constant 128 : index
    %92 = vector.load %arg13[%c4_77, %c128_78] : memref<16x544xbf16, #tpu.memory_space<vmem>>, vector<4x288xbf16>
    tpu.vector_store %arg13[%c4_77, %c128_78], %91 {strides = array<i32>} : memref<16x544xbf16, #tpu.memory_space<vmem>>, vector<4x288xbf16>,
    %c0_79 = arith.constant 0 : index
    %c127_80 = arith.constant 127 : index
    %93 = vector.load %arg12[%c0_79, %c127_80] : memref<64x416xbf16, #tpu.memory_space<vmem>>, vector<64x288xbf16>
    %c2_81 = arith.constant 2 : index
    %c0_82 = arith.constant 0 : index
    %c0_83 = arith.constant 0 : index
    %94 = vector.load %arg4[%c2_81, %c0_82, %c0_83] : memref<4x4x64xbf16, #tpu.memory_space<vmem>>, vector<1x4x64xbf16>
    %95 = vector.shape_cast %94 : vector<1x4x64xbf16> to vector<4x64xbf16>
    %cst_84 = arith.constant dense<0.000000e+00> : vector<4x288xf32>
    %96 = tpu.matmul %95, %93, %cst_84 {dimension_numbers = #tpu.dot_dimension_numbers<[1], [0], [0], [1], [0, 0, 1, 1], [], []>} : vector<4x64xbf16>, vector<64x288xbf16>, vector<4x288xf32> -> vector<4x288xf32>
    %97 = arith.addf %96, %6 : vector<4x288xf32>
    %cst_85 = arith.constant 0.000000e+00 : f32
    %cst_86 = arith.constant 6.000000e+00 : f32
    %98 = vector.broadcast %cst_85 : f32 to vector<4x288xf32>
    %99 = arith.maximumf %98, %97 : vector<4x288xf32>
    %100 = vector.broadcast %cst_86 : f32 to vector<4x288xf32>
    %101 = arith.minimumf %100, %99 : vector<4x288xf32>
    %102 = vector.broadcast %0 : vector<1x288xf32> to vector<4x288xf32>
    %103 = arith.mulf %101, %102 : vector<4x288xf32>
    %104 = arith.truncf %103 : vector<4x288xf32> to vector<4x288xbf16>
    %c8_87 = arith.constant 8 : index
    %c128_88 = arith.constant 128 : index
    %105 = vector.load %arg13[%c8_87, %c128_88] : memref<16x544xbf16, #tpu.memory_space<vmem>>, vector<4x288xbf16>
    tpu.vector_store %arg13[%c8_87, %c128_88], %104 {strides = array<i32>} : memref<16x544xbf16, #tpu.memory_space<vmem>>, vector<4x288xbf16>,
    %c0_89 = arith.constant 0 : index
    %c128_90 = arith.constant 128 : index
    %106 = vector.load %arg12[%c0_89, %c128_90] : memref<64x416xbf16, #tpu.memory_space<vmem>>, vector<64x288xbf16>
    %c3_91 = arith.constant 3 : index
    %c0_92 = arith.constant 0 : index
    %c0_93 = arith.constant 0 : index
    %107 = vector.load %arg4[%c3_91, %c0_92, %c0_93] : memref<4x4x64xbf16, #tpu.memory_space<vmem>>, vector<1x4x64xbf16>
    %108 = vector.shape_cast %107 : vector<1x4x64xbf16> to vector<4x64xbf16>
    %cst_94 = arith.constant dense<0.000000e+00> : vector<4x288xf32>
    %109 = tpu.matmul %108, %106, %cst_94 {dimension_numbers = #tpu.dot_dimension_numbers<[1], [0], [0], [1], [0, 0, 1, 1], [], []>} : vector<4x64xbf16>, vector<64x288xbf16>, vector<4x288xf32> -> vector<4x288xf32>
    %110 = arith.addf %109, %6 : vector<4x288xf32>
    %cst_95 = arith.constant 0.000000e+00 : f32
    %cst_96 = arith.constant 6.000000e+00 : f32
    %111 = vector.broadcast %cst_95 : f32 to vector<4x288xf32>
    %112 = arith.maximumf %111, %110 : vector<4x288xf32>
    %113 = vector.broadcast %cst_96 : f32 to vector<4x288xf32>
    %114 = arith.minimumf %113, %112 : vector<4x288xf32>
    %115 = vector.broadcast %0 : vector<1x288xf32> to vector<4x288xf32>
    %116 = arith.mulf %114, %115 : vector<4x288xf32>
    %117 = arith.truncf %116 : vector<4x288xf32> to vector<4x288xbf16>
    %c12_97 = arith.constant 12 : index
    %c128_98 = arith.constant 128 : index
    %118 = vector.load %arg13[%c12_97, %c128_98] : memref<16x544xbf16, #tpu.memory_space<vmem>>, vector<4x288xbf16>
    tpu.vector_store %arg13[%c12_97, %c128_98], %117 {strides = array<i32>} : memref<16x544xbf16, #tpu.memory_space<vmem>>, vector<4x288xbf16>,
    %c0_99 = arith.constant 0 : index
    %c109_100 = arith.constant 109 : index
    %119 = vector.load %arg13[%c0_99, %c109_100] : memref<16x544xbf16, #tpu.memory_space<vmem>>, vector<16x307xbf16>
    %c0_101 = arith.constant 0 : index
    %c109_102 = arith.constant 109 : index
    %120 = vector.load %arg14[%c0_101, %c109_102] : memref<64x416xbf16, #tpu.memory_space<vmem>>, vector<16x307xbf16>
    tpu.vector_store %arg14[%c0_101, %c109_102], %119 {strides = array<i32>} : memref<64x416xbf16, #tpu.memory_space<vmem>>, vector<16x307xbf16>,
    %c0_103 = arith.constant 0 : index
    %c110_104 = arith.constant 110 : index
    %121 = vector.load %arg13[%c0_103, %c110_104] : memref<16x544xbf16, #tpu.memory_space<vmem>>, vector<16x307xbf16>
    %c16_105 = arith.constant 16 : index
    %c109_106 = arith.constant 109 : index
    %122 = vector.load %arg14[%c16_105, %c109_106] : memref<64x416xbf16, #tpu.memory_space<vmem>>, vector<16x307xbf16>
    tpu.vector_store %arg14[%c16_105, %c109_106], %121 {strides = array<i32>} : memref<64x416xbf16, #tpu.memory_space<vmem>>, vector<16x307xbf16>,
    %c0_107 = arith.constant 0 : index
    %c127_108 = arith.constant 127 : index
    %123 = vector.load %arg13[%c0_107, %c127_108] : memref<16x544xbf16, #tpu.memory_space<vmem>>, vector<16x307xbf16>
    %c32_109 = arith.constant 32 : index
    %c109_110 = arith.constant 109 : index
    %124 = vector.load %arg14[%c32_109, %c109_110] : memref<64x416xbf16, #tpu.memory_space<vmem>>, vector<16x307xbf16>
    tpu.vector_store %arg14[%c32_109, %c109_110], %123 {strides = array<i32>} : memref<64x416xbf16, #tpu.memory_space<vmem>>, vector<16x307xbf16>,
    %c0_111 = arith.constant 0 : index
    %c128_112 = arith.constant 128 : index
    %125 = vector.load %arg13[%c0_111, %c128_112] : memref<16x544xbf16, #tpu.memory_space<vmem>>, vector<16x307xbf16>
    %c48_113 = arith.constant 48 : index
    %c109_114 = arith.constant 109 : index
    %126 = vector.load %arg14[%c48_113, %c109_114] : memref<64x416xbf16, #tpu.memory_space<vmem>>, vector<16x307xbf16>
    tpu.vector_store %arg14[%c48_113, %c109_114], %125 {strides = array<i32>} : memref<64x416xbf16, #tpu.memory_space<vmem>>, vector<16x307xbf16>,
    %c0_115 = arith.constant 0 : index
    %c109_116 = arith.constant 109 : index
    %127 = vector.load %arg14[%c0_115, %c109_116] : memref<64x416xbf16, #tpu.memory_space<vmem>>, vector<64x288xbf16>
    %c0_117 = arith.constant 0 : index
    %c0_118 = arith.constant 0 : index
    %c0_119 = arith.constant 0 : index
    %128 = vector.load %arg6[%c0_117, %c0_118, %c0_119] : memref<4x8x64xbf16, #tpu.memory_space<vmem>>, vector<1x8x64xbf16>
    %129 = vector.shape_cast %128 : vector<1x8x64xbf16> to vector<8x64xbf16>
    %cst_120 = arith.constant dense<0.000000e+00> : vector<8x288xf32>
    %130 = tpu.matmul %129, %127, %cst_120 {dimension_numbers = #tpu.dot_dimension_numbers<[1], [0], [0], [1], [0, 0, 1, 1], [], []>} : vector<8x64xbf16>, vector<64x288xbf16>, vector<8x288xf32> -> vector<8x288xf32>
    %131 = arith.addf %130, %9 : vector<8x288xf32>
    %132 = vector.broadcast %0 : vector<1x288xf32> to vector<8x288xf32>
    %133 = arith.mulf %131, %132 : vector<8x288xf32>
    %134 = arith.truncf %133 : vector<8x288xf32> to vector<8x288xbf16>
    %c0_121 = arith.constant 0 : index
    %c0_122 = arith.constant 0 : index
    %c0_123 = arith.constant 0 : index
    %c0_124 = arith.constant 0 : index
    %135 = vector.load %arg9[%c0_121, %c0_122, %c0_123, %c0_124] : memref<1x4x8x288xbf16, #tpu.memory_space<vmem>>, vector<1x1x8x288xbf16>
    %136 = vector.shape_cast %135 : vector<1x1x8x288xbf16> to vector<8x288xbf16>
    %137 = vector.shape_cast %134 : vector<8x288xbf16> to vector<1x1x8x288xbf16>
    tpu.vector_store %arg9[%c0_121, %c0_122, %c0_123, %c0_124], %137 {strides = array<i32>} : memref<1x4x8x288xbf16, #tpu.memory_space<vmem>>, vector<1x1x8x288xbf16>,
    %c0_125 = arith.constant 0 : index
    %c110_126 = arith.constant 110 : index
    %138 = vector.load %arg14[%c0_125, %c110_126] : memref<64x416xbf16, #tpu.memory_space<vmem>>, vector<64x288xbf16>
    %c1_127 = arith.constant 1 : index
    %c0_128 = arith.constant 0 : index
    %c0_129 = arith.constant 0 : index
    %139 = vector.load %arg6[%c1_127, %c0_128, %c0_129] : memref<4x8x64xbf16, #tpu.memory_space<vmem>>, vector<1x8x64xbf16>
    %140 = vector.shape_cast %139 : vector<1x8x64xbf16> to vector<8x64xbf16>
    %cst_130 = arith.constant dense<0.000000e+00> : vector<8x288xf32>
    %141 = tpu.matmul %140, %138, %cst_130 {dimension_numbers = #tpu.dot_dimension_numbers<[1], [0], [0], [1], [0, 0, 1, 1], [], []>} : vector<8x64xbf16>, vector<64x288xbf16>, vector<8x288xf32> -> vector<8x288xf32>
    %142 = arith.addf %141, %9 : vector<8x288xf32>
    %143 = vector.broadcast %0 : vector<1x288xf32> to vector<8x288xf32>
    %144 = arith.mulf %142, %143 : vector<8x288xf32>
    %145 = arith.truncf %144 : vector<8x288xf32> to vector<8x288xbf16>
    %c0_131 = arith.constant 0 : index
    %c1_132 = arith.constant 1 : index
    %c0_133 = arith.constant 0 : index
    %c0_134 = arith.constant 0 : index
    %146 = vector.load %arg9[%c0_131, %c1_132, %c0_133, %c0_134] : memref<1x4x8x288xbf16, #tpu.memory_space<vmem>>, vector<1x1x8x288xbf16>
    %147 = vector.shape_cast %146 : vector<1x1x8x288xbf16> to vector<8x288xbf16>
    %148 = vector.shape_cast %145 : vector<8x288xbf16> to vector<1x1x8x288xbf16>
    tpu.vector_store %arg9[%c0_131, %c1_132, %c0_133, %c0_134], %148 {strides = array<i32>} : memref<1x4x8x288xbf16, #tpu.memory_space<vmem>>, vector<1x1x8x288xbf16>,
    %c0_135 = arith.constant 0 : index
    %c127_136 = arith.constant 127 : index
    %149 = vector.load %arg14[%c0_135, %c127_136] : memref<64x416xbf16, #tpu.memory_space<vmem>>, vector<64x288xbf16>
    %c2_137 = arith.constant 2 : index
    %c0_138 = arith.constant 0 : index
    %c0_139 = arith.constant 0 : index
    %150 = vector.load %arg6[%c2_137, %c0_138, %c0_139] : memref<4x8x64xbf16, #tpu.memory_space<vmem>>, vector<1x8x64xbf16>
    %151 = vector.shape_cast %150 : vector<1x8x64xbf16> to vector<8x64xbf16>
    %cst_140 = arith.constant dense<0.000000e+00> : vector<8x288xf32>
    %152 = tpu.matmul %151, %149, %cst_140 {dimension_numbers = #tpu.dot_dimension_numbers<[1], [0], [0], [1], [0, 0, 1, 1], [], []>} : vector<8x64xbf16>, vector<64x288xbf16>, vector<8x288xf32> -> vector<8x288xf32>
    %153 = arith.addf %152, %9 : vector<8x288xf32>
    %154 = vector.broadcast %0 : vector<1x288xf32> to vector<8x288xf32>
    %155 = arith.mulf %153, %154 : vector<8x288xf32>
    %156 = arith.truncf %155 : vector<8x288xf32> to vector<8x288xbf16>
    %c0_141 = arith.constant 0 : index
    %c2_142 = arith.constant 2 : index
    %c0_143 = arith.constant 0 : index
    %c0_144 = arith.constant 0 : index
    %157 = vector.load %arg9[%c0_141, %c2_142, %c0_143, %c0_144] : memref<1x4x8x288xbf16, #tpu.memory_space<vmem>>, vector<1x1x8x288xbf16>
    %158 = vector.shape_cast %157 : vector<1x1x8x288xbf16> to vector<8x288xbf16>
    %159 = vector.shape_cast %156 : vector<8x288xbf16> to vector<1x1x8x288xbf16>
    tpu.vector_store %arg9[%c0_141, %c2_142, %c0_143, %c0_144], %159 {strides = array<i32>} : memref<1x4x8x288xbf16, #tpu.memory_space<vmem>>, vector<1x1x8x288xbf16>,
    %c0_145 = arith.constant 0 : index
    %c128_146 = arith.constant 128 : index
    %160 = vector.load %arg14[%c0_145, %c128_146] : memref<64x416xbf16, #tpu.memory_space<vmem>>, vector<64x288xbf16>
    %c3_147 = arith.constant 3 : index
    %c0_148 = arith.constant 0 : index
    %c0_149 = arith.constant 0 : index
    %161 = vector.load %arg6[%c3_147, %c0_148, %c0_149] : memref<4x8x64xbf16, #tpu.memory_space<vmem>>, vector<1x8x64xbf16>
    %162 = vector.shape_cast %161 : vector<1x8x64xbf16> to vector<8x64xbf16>
    %cst_150 = arith.constant dense<0.000000e+00> : vector<8x288xf32>
    %163 = tpu.matmul %162, %160, %cst_150 {dimension_numbers = #tpu.dot_dimension_numbers<[1], [0], [0], [1], [0, 0, 1, 1], [], []>} : vector<8x64xbf16>, vector<64x288xbf16>, vector<8x288xf32> -> vector<8x288xf32>
    %164 = arith.addf %163, %9 : vector<8x288xf32>
    %165 = vector.broadcast %0 : vector<1x288xf32> to vector<8x288xf32>
    %166 = arith.mulf %164, %165 : vector<8x288xf32>
    %167 = arith.truncf %166 : vector<8x288xf32> to vector<8x288xbf16>
    %c0_151 = arith.constant 0 : index
    %c3_152 = arith.constant 3 : index
    %c0_153 = arith.constant 0 : index
    %c0_154 = arith.constant 0 : index
    %168 = vector.load %arg9[%c0_151, %c3_152, %c0_153, %c0_154] : memref<1x4x8x288xbf16, #tpu.memory_space<vmem>>, vector<1x1x8x288xbf16>
    %169 = vector.shape_cast %168 : vector<1x1x8x288xbf16> to vector<8x288xbf16>
    %170 = vector.shape_cast %167 : vector<8x288xbf16> to vector<1x1x8x288xbf16>
    tpu.vector_store %arg9[%c0_151, %c3_152, %c0_153, %c0_154], %170 {strides = array<i32>} : memref<1x4x8x288xbf16, #tpu.memory_space<vmem>>, vector<1x1x8x288xbf16>,
    return
  }
  func.func @transform_0(%arg0: i32) -> (i32, i32, i32) {
    %c0_i32 = arith.constant 0 : i32
    %c0_i32_0 = arith.constant 0 : i32
    %c0_i32_1 = arith.constant 0 : i32
    return %arg0, %c0_i32, %c0_i32_0 : i32, i32, i32
  }
  func.func @transform_1(%arg0: i32) -> (i32, i32, i32) {
    %c0_i32 = arith.constant 0 : i32
    %c0_i32_0 = arith.constant 0 : i32
    %c0_i32_1 = arith.constant 0 : i32
    %c0_i32_2 = arith.constant 0 : i32
    return %c0_i32, %c0_i32_0, %c0_i32_1 : i32, i32, i32
  }
  func.func @transform_2(%arg0: i32) -> (i32, i32) {
    %c0_i32 = arith.constant 0 : i32
    %c0_i32_0 = arith.constant 0 : i32
    %c0_i32_1 = arith.constant 0 : i32
    return %c0_i32, %c0_i32_0 : i32, i32
  }
  func.func @transform_3(%arg0: i32) -> (i32, i32, i32) {
    %c0_i32 = arith.constant 0 : i32
    %c0_i32_0 = arith.constant 0 : i32
    %c0_i32_1 = arith.constant 0 : i32
    %c0_i32_2 = arith.constant 0 : i32
    return %c0_i32, %c0_i32_0, %c0_i32_1 : i32, i32, i32
  }
  func.func @transform_4(%arg0: i32) -> (i32, i32) {
    %c0_i32 = arith.constant 0 : i32
    %c0_i32_0 = arith.constant 0 : i32
    %c0_i32_1 = arith.constant 0 : i32
    return %c0_i32, %c0_i32_0 : i32, i32
  }
  func.func @transform_5(%arg0: i32) -> (i32, i32, i32) {
    %c0_i32 = arith.constant 0 : i32
    %c0_i32_0 = arith.constant 0 : i32
    %c0_i32_1 = arith.constant 0 : i32
    %c0_i32_2 = arith.constant 0 : i32
    return %c0_i32, %c0_i32_0, %c0_i32_1 : i32, i32, i32
  }
  func.func @transform_6(%arg0: i32) -> (i32, i32) {
    %c0_i32 = arith.constant 0 : i32
    %c0_i32_0 = arith.constant 0 : i32
    %c0_i32_1 = arith.constant 0 : i32
    return %c0_i32, %c0_i32_0 : i32, i32
  }
  func.func @transform_7(%arg0: i32) -> (i32, i32) {
    %c0_i32 = arith.constant 0 : i32
    %c0_i32_0 = arith.constant 0 : i32
    %c0_i32_1 = arith.constant 0 : i32
    return %c0_i32, %c0_i32_0 : i32, i32
  }
  func.func @transform_8(%arg0: i32) -> (i32, i32, i32, i32) {
    %c0_i32 = arith.constant 0 : i32
    %c0_i32_0 = arith.constant 0 : i32
    %c0_i32_1 = arith.constant 0 : i32
    %c0_i32_2 = arith.constant 0 : i32
    return %arg0, %c0_i32, %c0_i32_0, %c0_i32_1 : i32, i32, i32, i32
  }
}

</mosaic_0001>

<llo_original>
// kernel: unet_block_forward.1
$region0: #{unet_block_forward.1}
  #allocation0 [shape = 'u32[]', space=smem, size = 0x4, offset = 0x4, fixed_abs, tag = 'smem constant byte address 0x4 - core index']
  #allocation1 [shape = 'u32[144,128]{1,0:T(1,128)}', space=vmem, size = 0x12000, scoped, tag = 'internal scratch']
  #allocation2 [shape = 'bf16[16,512]{1,0:T(16,128)(2,1)}', space=vmem, size = 0x4000, scoped, tag = 'scratch operand']
  #allocation3 [shape = 'bf16[16,544]{1,0:T(16,128)(2,1)}', space=vmem, size = 0x5000, scoped, tag = 'scratch operand']
  #allocation4 [shape = 'bf16[64,416]{1,0:T(16,128)(2,1)}', space=vmem, size = 0x10000, scoped, tag = 'scratch operand']
  #allocation5 [shape = 'bf16[16,544]{1,0:T(16,128)(2,1)}', space=vmem, size = 0x5000, scoped, tag = 'scratch operand']
  #allocation6 [shape = 'bf16[64,416]{1,0:T(16,128)(2,1)}', space=vmem, size = 0x10000, scoped, tag = 'scratch operand']
  %s0 = inlined_call_operand.vmem [shape: bf16[2,4,324], index: 0, kind: input, shape index: {}]
  %s1 = inlined_call_operand.vmem [shape: bf16[4,4,16], index: 1, kind: input, shape index: {}]
  %s2 = inlined_call_operand.vmem [shape: f32[4,1], index: 2, kind: input, shape index: {}]
  %s3 = inlined_call_operand.vmem [shape: bf16[4,4,64], index: 3, kind: input, shape index: {}]
  %s4 = inlined_call_operand.vmem [shape: f32[4,1], index: 4, kind: input, shape index: {}]
  %s5 = inlined_call_operand.vmem [shape: bf16[4,8,64], index: 5, kind: input, shape index: {}]
  %s6 = inlined_call_operand.vmem [shape: f32[8,1], index: 6, kind: input, shape index: {}]
  %s7 = inlined_call_operand.vmem [shape: f32[1,288], index: 7, kind: input, shape index: {}]
  %s8 = inlined_call_operand.vmem [shape: bf16[2,4,8,288], index: 8, kind: output, shape index: {}]
  %s9 = sld [smem:[#allocation0]]
  $region65: #{unet_block_forward.1} parent=0
    _
  %s11 = ssub.s32 1, %s9
  %s12 = scalar_select 0, %s11, %s9
  loop: start=0, step=1, limit=4
  $region2: #{unet_block_forward.1} parent=0 // loop_pre_header
    _
  $region3: #{unet_block_forward.1} parent=0 // loop_header
    %s14 = sphi 0, %s18
    %p15 = scmp.ge.s32.totalorder %s14, 4
    %s24 = sphi 0, %s26
    %s27 = sphi 0, %s24
    %s28 = sphi 0, %s27
    %s44 = sphi 0, %s28
    %s48 = sphi 0, %s48
    %s50 = sphi 0, %s48
    %s51 = sphi 0, %s50
    %s65 = sphi 0, %s51
    %s69 = sphi 0, %s69
    %s71 = sphi 0, %s69
    %s72 = sphi 0, %s71
    %s86 = sphi 0, %s72
    %s90 = sphi 0, %s90
    %s92 = sphi 0, %s90
    %s93 = sphi 0, %s92
    %s107 = sphi 0, %s93
    %s111 = sphi 0, %s111
    %s113 = sphi 0, %s111
    %s114 = sphi 0, %s113
    %s128 = sphi 0, %s114
    %s132 = sphi 0, %s132
    %s134 = sphi 0, %s132
    %s135 = sphi 0, %s134
    %s149 = sphi 0, %s135
    %s153 = sphi 0, %s153
    %s155 = sphi 0, %s153
    %s156 = sphi 0, %s155
    %s170 = sphi 0, %s156
    %s174 = sphi 0, %s174
    %s176 = sphi 0, %s174
    %s177 = sphi 0, %s176
    %s191 = sphi 0, %s177
    %s197 = sphi 0, %s199
    %s200 = sphi 0, %s197
    %s201 = sphi 0, %s200
    %s217 = sphi 0, %s201
  $region4: #{unet_block_forward.1} parent=0 // loop_header_branch
    %17 = sbr.rel (%p15) target = $region8
  $region5: #{unet_block_forward.1} parent=0 // loop_body
    %s19 = ssub.s32 %s14, 1
    %s20 = ssub.s32 %s14, 2
    %s21 = sadd.s32 %s14, 1
    %s22 = ssub.s32 %s14, %s21
    %p23 = scmp.eq.s32.totalorder %s22, 0
    %s25 = sadd.s32 %s24, 1
    %s26 = scalar_select %p23, %s24, %s25
    %p29 = pneg %p23
    %p30 = scmp.eq.s32.totalorder %s14, 1
    %p31 = por %p29, %p30
    %p32 = scmp.ne.s32.totalorder %s24, %s27
    %p33 = scmp.eq.s32.totalorder %s14, 0
    %p34 = por %p32, %p33
    %p35 = scmp.ne.s32.totalorder %s24, %s27
    %p36 = scmp.eq.s32.totalorder %s19, 1
    %p37 = por %p35, %p36
    %p38 = scmp.ne.s32.totalorder %s27, %s28
    %p39 = scmp.eq.s32.totalorder %s19, 0
    %p40 = por %p38, %p39
    %p41 = scmp.ne.s32.totalorder %s27, %s28
    %p42 = scmp.eq.s32.totalorder %s20, 1
    %p43 = por %p41, %p42
    %p45 = scmp.ne.s32.totalorder %s28, %s44
    %p46 = scmp.eq.s32.totalorder %s20, 0
    %p47 = por %p45, %p46
    %s49 = sadd.s32 %s48, 1
    %p52 = scmp.eq.s32.totalorder %s14, 1
    %p53 = scmp.ne.s32.totalorder %s48, %s50
    %p54 = scmp.eq.s32.totalorder %s14, 0
    %p55 = por %p53, %p54
    %p56 = scmp.ne.s32.totalorder %s48, %s50
    %p57 = scmp.eq.s32.totalorder %s19, 1
    %p58 = por %p56, %p57
    %p59 = scmp.ne.s32.totalorder %s50, %s51
    %p60 = scmp.eq.s32.totalorder %s19, 0
    %p61 = por %p59, %p60
    %p62 = scmp.ne.s32.totalorder %s50, %s51
    %p63 = scmp.eq.s32.totalorder %s20, 1
    %p64 = por %p62, %p63
    %p66 = scmp.ne.s32.totalorder %s51, %s65
    %p67 = scmp.eq.s32.totalorder %s20, 0
    %p68 = por %p66, %p67
    %s70 = sadd.s32 %s69, 1
    %p73 = scmp.eq.s32.totalorder %s14, 1
    %p74 = scmp.ne.s32.totalorder %s69, %s71
    %p75 = scmp.eq.s32.totalorder %s14, 0
    %p76 = por %p74, %p75
    %p77 = scmp.ne.s32.totalorder %s69, %s71
    %p78 = scmp.eq.s32.totalorder %s19, 1
    %p79 = por %p77, %p78
    %p80 = scmp.ne.s32.totalorder %s71, %s72
    %p81 = scmp.eq.s32.totalorder %s19, 0
    %p82 = por %p80, %p81
    %p83 = scmp.ne.s32.totalorder %s71, %s72
    %p84 = scmp.eq.s32.totalorder %s20, 1
    %p85 = por %p83, %p84
    %p87 = scmp.ne.s32.totalorder %s72, %s86
    %p88 = scmp.eq.s32.totalorder %s20, 0
    %p89 = por %p87, %p88
    %s91 = sadd.s32 %s90, 1
    %p94 = scmp.eq.s32.totalorder %s14, 1
    %p95 = scmp.ne.s32.totalorder %s90, %s92
    %p96 = scmp.eq.s32.totalorder %s14, 0
    %p97 = por %p95, %p96
    %p98 = scmp.ne.s32.totalorder %s90, %s92
    %p99 = scmp.eq.s32.totalorder %s19, 1
    %p100 = por %p98, %p99
    %p101 = scmp.ne.s32.totalorder %s92, %s93
    %p102 = scmp.eq.s32.totalorder %s19, 0
    %p103 = por %p101, %p102
    %p104 = scmp.ne.s32.totalorder %s92, %s93
    %p105 = scmp.eq.s32.totalorder %s20, 1
    %p106 = por %p104, %p105
    %p108 = scmp.ne.s32.totalorder %s93, %s107
    %p109 = scmp.eq.s32.totalorder %s20, 0
    %p110 = por %p108, %p109
    %s112 = sadd.s32 %s111, 1
    %p115 = scmp.eq.s32.totalorder %s14, 1
    %p116 = scmp.ne.s32.totalorder %s111, %s113
    %p117 = scmp.eq.s32.totalorder %s14, 0
    %p118 = por %p116, %p117
    %p119 = scmp.ne.s32.totalorder %s111, %s113
    %p120 = scmp.eq.s32.totalorder %s19, 1
    %p121 = por %p119, %p120
    %p122 = scmp.ne.s32.totalorder %s113, %s114
    %p123 = scmp.eq.s32.totalorder %s19, 0
    %p124 = por %p122, %p123
    %p125 = scmp.ne.s32.totalorder %s113, %s114
    %p126 = scmp.eq.s32.totalorder %s20, 1
    %p127 = por %p125, %p126
    %p129 = scmp.ne.s32.totalorder %s114, %s128
    %p130 = scmp.eq.s32.totalorder %s20, 0
    %p131 = por %p129, %p130
    %s133 = sadd.s32 %s132, 1
    %p136 = scmp.eq.s32.totalorder %s14, 1
    %p137 = scmp.ne.s32.totalorder %s132, %s134
    %p138 = scmp.eq.s32.totalorder %s14, 0
    %p139 = por %p137, %p138
    %p140 = scmp.ne.s32.totalorder %s132, %s134
    %p141 = scmp.eq.s32.totalorder %s19, 1
    %p142 = por %p140, %p141
    %p143 = scmp.ne.s32.totalorder %s134, %s135
    %p144 = scmp.eq.s32.totalorder %s19, 0
    %p145 = por %p143, %p144
    %p146 = scmp.ne.s32.totalorder %s134, %s135
    %p147 = scmp.eq.s32.totalorder %s20, 1
    %p148 = por %p146, %p147
    %p150 = scmp.ne.s32.totalorder %s135, %s149
    %p151 = scmp.eq.s32.totalorder %s20, 0
    %p152 = por %p150, %p151
    %s154 = sadd.s32 %s153, 1
    %p157 = scmp.eq.s32.totalorder %s14, 1
    %p158 = scmp.ne.s32.totalorder %s153, %s155
    %p159 = scmp.eq.s32.totalorder %s14, 0
    %p160 = por %p158, %p159
    %p161 = scmp.ne.s32.totalorder %s153, %s155
    %p162 = scmp.eq.s32.totalorder %s19, 1
    %p163 = por %p161, %p162
    %p164 = scmp.ne.s32.totalorder %s155, %s156
    %p165 = scmp.eq.s32.totalorder %s19, 0
    %p166 = por %p164, %p165
    %p167 = scmp.ne.s32.totalorder %s155, %s156
    %p168 = scmp.eq.s32.totalorder %s20, 1
    %p169 = por %p167, %p168
    %p171 = scmp.ne.s32.totalorder %s156, %s170
    %p172 = scmp.eq.s32.totalorder %s20, 0
    %p173 = por %p171, %p172
    %s175 = sadd.s32 %s174, 1
    %p178 = scmp.eq.s32.totalorder %s14, 1
    %p179 = scmp.ne.s32.totalorder %s174, %s176
    %p180 = scmp.eq.s32.totalorder %s14, 0
    %p181 = por %p179, %p180
    %p182 = scmp.ne.s32.totalorder %s174, %s176
    %p183 = scmp.eq.s32.totalorder %s19, 1
    %p184 = por %p182, %p183
    %p185 = scmp.ne.s32.totalorder %s176, %s177
    %p186 = scmp.eq.s32.totalorder %s19, 0
    %p187 = por %p185, %p186
    %p188 = scmp.ne.s32.totalorder %s176, %s177
    %p189 = scmp.eq.s32.totalorder %s20, 1
    %p190 = por %p188, %p189
    %p192 = scmp.ne.s32.totalorder %s177, %s191
    %p193 = scmp.eq.s32.totalorder %s20, 0
    %p194 = por %p192, %p193
    %s195 = ssub.s32 %s14, %s21
    %p196 = scmp.eq.s32.totalorder %s195, 0
    %s198 = sadd.s32 %s197, 1
    %s199 = scalar_select %p196, %s197, %s198
    %p202 = pneg %p196
    %p203 = scmp.eq.s32.totalorder %s14, 1
    %p204 = por %p202, %p203
    %p205 = scmp.ne.s32.totalorder %s197, %s200
    %p206 = scmp.eq.s32.totalorder %s14, 0
    %p207 = por %p205, %p206
    %p208 = scmp.ne.s32.totalorder %s197, %s200
    %p209 = scmp.eq.s32.totalorder %s19, 1
    %p210 = por %p208, %p209
    %p211 = scmp.ne.s32.totalorder %s200, %s201
    %p212 = scmp.eq.s32.totalorder %s19, 0
    %p213 = por %p211, %p212
    %p214 = scmp.ne.s32.totalorder %s200, %s201
    %p215 = scmp.eq.s32.totalorder %s20, 1
    %p216 = por %p214, %p215
    %p218 = scmp.ne.s32.totalorder %s201, %s217
    %p219 = scmp.eq.s32.totalorder %s20, 0
    %p220 = por %p218, %p219
    %p221 = scmp.le.s32.totalorder 1, %s14
    %p222 = scmp.lt.s32.totalorder %s14, 3
    %p223 = pnand %p221, %p222
    %p224 = pneg %p223
    // Predicated region
    $region9: #{unet_block_forward.1} parent=5 // pred_check
      _
    $region10: #{unet_block_forward.1} parent=5 // pred_check_branch
      %226 = sbr.rel (%p223) target = $region12
    $region11: #{unet_block_forward.1} parent=5 // pred_region
      %s227 = ssub.s32 %s14, 1
      // Predicated region
      $region13: #{unet_block_forward.1} parent=11 // pred_check
        %p228 = pneg %p61
      $region14: #{unet_block_forward.1} parent=11 // pred_check_branch
        %230 = sbr.rel (%p228) target = $region16
      $region15: #{unet_block_forward.1} parent=11 // pred_region
        _
      $region16: #{unet_block_forward.1} parent=11 // pred_fallthru
        _
      // Predicated region
      $region17: #{unet_block_forward.1} parent=11 // pred_check
        %p231 = pneg %p82
      $region18: #{unet_block_forward.1} parent=11 // pred_check_branch
        %233 = sbr.rel (%p231) target = $region20
      $region19: #{unet_block_forward.1} parent=11 // pred_region
        _
      $region20: #{unet_block_forward.1} parent=11 // pred_fallthru
        _
      // Predicated region
      $region21: #{unet_block_forward.1} parent=11 // pred_check
        %p234 = pneg %p103
      $region22: #{unet_block_forward.1} parent=11 // pred_check_branch
        %236 = sbr.rel (%p234) target = $region24
      $region23: #{unet_block_forward.1} parent=11 // pred_region
        _
      $region24: #{unet_block_forward.1} parent=11 // pred_fallthru
        _
      // Predicated region
      $region25: #{unet_block_forward.1} parent=11 // pred_check
        %p237 = pneg %p124
      $region26: #{unet_block_forward.1} parent=11 // pred_check_branch
        %239 = sbr.rel (%p237) target = $region28
      $region27: #{unet_block_forward.1} parent=11 // pred_region
        _
      $region28: #{unet_block_forward.1} parent=11 // pred_fallthru
        _
      // Predicated region
      $region29: #{unet_block_forward.1} parent=11 // pred_check
        %p240 = pneg %p145
      $region30: #{unet_block_forward.1} parent=11 // pred_check_branch
        %242 = sbr.rel (%p240) target = $region32
      $region31: #{unet_block_forward.1} parent=11 // pred_region
        _
      $region32: #{unet_block_forward.1} parent=11 // pred_fallthru
        _
      // Predicated region
      $region33: #{unet_block_forward.1} parent=11 // pred_check
        %p243 = pneg %p166
      $region34: #{unet_block_forward.1} parent=11 // pred_check_branch
        %245 = sbr.rel (%p243) target = $region36
      $region35: #{unet_block_forward.1} parent=11 // pred_region
        _
      $region36: #{unet_block_forward.1} parent=11 // pred_fallthru
        _
      // Predicated region
      $region37: #{unet_block_forward.1} parent=11 // pred_check
        %p246 = pneg %p187
      $region38: #{unet_block_forward.1} parent=11 // pred_check_branch
        %248 = sbr.rel (%p246) target = $region40
      $region39: #{unet_block_forward.1} parent=11 // pred_region
        _
      $region40: #{unet_block_forward.1} parent=11 // pred_fallthru
        _
    $region12: #{unet_block_forward.1} parent=5 // pred_fallthru
      _
    %p249 = scmp.lt.s32.totalorder %s14, 2
    // Predicated region
    $region41: #{unet_block_forward.1} parent=5 // pred_check
      %p250 = pneg %p249
    $region42: #{unet_block_forward.1} parent=5 // pred_check_branch
      %252 = sbr.rel (%p250) target = $region44
    $region43: #{unet_block_forward.1} parent=5 // pred_region
      // Predicated region
      $region45: #{unet_block_forward.1} parent=43 // pred_check
        %p253 = pneg %p34
      $region46: #{unet_block_forward.1} parent=43 // pred_check_branch
        %255 = sbr.rel (%p253) target = $region48
      $region47: #{unet_block_forward.1} parent=43 // pred_region
        %p256 = scmp.lt.s32.totalorder %s14, 1
        %s257 = scalar_select %p256, %s14, 1
        %s258 = smul.addr %s257, 3
        %s259 = smul.addr %s258, 2
        %s260 = scalar_lea.vmem %s0, %s259
      $region48: #{unet_block_forward.1} parent=43 // pred_fallthru
        _
    $region44: #{unet_block_forward.1} parent=5 // pred_fallthru
      _
    %p261 = scmp.le.s32.totalorder 1, %s14
    %p262 = scmp.lt.s32.totalorder %s14, 3
    %p263 = pnand %p261, %p262
    %p264 = pneg %p263
    // Predicated region
    $region49: #{unet_block_forward.1} parent=5 // pred_check
      _
    $region50: #{unet_block_forward.1} parent=5 // pred_check_branch
      %266 = sbr.rel (%p263) target = $region52
    $region51: #{unet_block_forward.1} parent=5 // pred_region
      %s267 = ssub.s32 %s14, 1
      %p268 = scmp.lt.s32.totalorder %s19, 1
      %s269 = scalar_select %p268, %s19, 1
      %s270 = smul.addr %s269, 3
      %s271 = smul.addr %s270, 2
      %s272 = scalar_lea.vmem %s0, %s271
      %p273 = pneg %p40
      %p274 = pneg %p37
      %p275 = pneg %p61
      %p276 = pneg %p58
      %p277 = pneg %p82
      %p278 = pneg %p79
      %p279 = pneg %p103
      %p280 = pneg %p100
      %p281 = pneg %p124
      %p282 = pneg %p121
      %p283 = pneg %p145
      %p284 = pneg %p142
      %p285 = pneg %p166
      %p286 = pneg %p163
      %p287 = pneg %p187
      %p288 = pneg %p184
      %p289 = pneg %p213
      %p290 = pneg %p210
      %p291 = scmp.lt.s32.totalorder %s19, 1
      %s292 = scalar_select %p291, %s19, 1
      %s293 = smul.addr %s292, 12
      %s294 = smul.addr %s293, 4
      %s295 = scalar_lea.vmem %s8, %s294
      %p296 = scmp.lt.s32.totalorder %s19, 1
      %s297 = scalar_select %p296, %s19, 1
      %s298 = smul.addr %s297, 3
      %s299 = smul.addr %s298, 2
      %s300 = scalar_lea.vmem %s0, %s299
      %p301 = scmp.lt.s32.totalorder %s19, 1
      %s302 = scalar_select %p301, %s19, 1
      %s303 = smul.addr %s302, 12
      %s304 = smul.addr %s303, 4
      %s305 = scalar_lea.vmem %s8, %s304
      %v307 = vld [vmem:[%s7] sm:$0x7]
      %v308 = vld [vmem:[%s2] sm:$0xf]
      %310 = vset.pattern.permute.xlu0 0
      %311 = vperm.xlu0 %310, %v308
      %v312 = vpop.permute.xlu0 %311
      %v314 = vld [vmem:[%s4] sm:$0xf]
      %316 = vset.pattern.permute.xlu0 0
      %317 = vperm.xlu0 %316, %v314
      %v318 = vpop.permute.xlu0 %317
      %v320 = vld [vmem:[%s6] sm:$0xff]
      %322 = vset.pattern.permute.xlu0 0
      %323 = vperm.xlu0 %322, %v320
      %v324 = vpop.permute.xlu0 %323
      %326 = vst [vmem:[#allocation2] sm:$0xff] 0
      %327 = vst [vmem:[#allocation2 + $0x8] sm:$0xff] 0
      %328 = vst [vmem:[#allocation2 + $0x10] sm:$0xff] 0
      %329 = vst [vmem:[#allocation2 + $0x18] sm:$0xff] 0
      %v330 = vld [vmem:[%s300] sm:$0x3f]
      %v332 = vcombine.high %v330, %v330
      %v334 = vunpack.c.l.s4 1983009808
      %v335 = vunpack.c.0.s8 %v334
      %v336 = vlaneseq
      %v337 = vshrl.u32 %v336, 7
      %v338 = vsub.s32 %v335, %v337
      %v339 = vrot.slane %v330, %v338
      %v341 = vunpack.c.l.s4 1983009808
      %v342 = vunpack.c.0.s8 %v341
      %v343 = vlaneseq
      %v344 = vshrl.u32 %v343, 7
      %v345 = vsub.s32 %v342, %v344
      %v346 = vrot.slane %v332, %v345
      %v347 = vcombine.high %v339, %v339
      %348 = vrot.lane.b32.xlu0 %v339, 1
      %v349 = vpop.permute.xlu0 %348
      %350 = vrot.lane.b32.xlu0 %v347, 1
      %v351 = vpop.permute.xlu0 %350
      %352 = vrot.lane.b32.xlu0 %v346, 1
      %v353 = vpop.permute.xlu0 %352
      %vm354 = vcmask 7168
      %v355 = vsel %vm354, %v349, %v351
      %v356 = vsel %vm354, %v351, %v353
      %vm360 = vcmask 1041416
      %361 = vst.msk [vmem:[#allocation2 + $0x8] sm:$0x3] %vm360, %v349
      %362 = vst [vmem:[#allocation2 + $0x10] sm:$0x3] %v355
      %vm363 = vcmask 558080
      %364 = vst.msk [vmem:[#allocation2 + $0x18] sm:$0x3] %vm363, %v356
      %v365 = vcombine.low %v330, %v330
      %v367 = vunpack.c.l.s4 1983009808
      %v368 = vunpack.c.0.s8 %v367
      %v369 = vlaneseq
      %v370 = vshrl.u32 %v369, 7
      %v371 = vsub.s32 %v368, %v370
      %v372 = vrot.slane %v365, %v371
      %v373 = vcombine.high %v372, %v372
      %377 = vst [vmem:[#allocation2 + $0x8] sm:$0xc] %v372
      %378 = vst [vmem:[#allocation2 + $0x10] sm:$0xc] %v373
      %vm379 = vcmask 551938
      %380 = vst.msk [vmem:[#allocation2 + $0x18] sm:$0xc] %vm379, %v339
      %v381 = vcombine.low %v339, %v339
      %v382 = vcombine.low %v346, %v346
      %383 = vrot.lane.b32.xlu0 %v381, 111
      %v384 = vpop.permute.xlu0 %383
      %385 = vrot.lane.b32.xlu0 %v339, 111
      %v386 = vpop.permute.xlu0 %385
      %387 = vrot.lane.b32.xlu0 %v382, 111
      %v388 = vpop.permute.xlu0 %387
      %vm389 = vcmask 908288
      %v390 = vsel %vm389, %v384, %v386
      %v391 = vsel %vm389, %v386, %v388
      %vm396 = vcmask 1046396
      %397 = vst.msk [vmem:[#allocation2] sm:$0x30] %vm396, %v384
      %398 = vst [vmem:[#allocation2 + $0x8] sm:$0x30] %v390
      %399 = vst [vmem:[#allocation2 + $0x10] sm:$0x30] %v391
      %vm400 = vcmask 414724
      %401 = vst.msk [vmem:[#allocation2 + $0x18] sm:$0x30] %vm400, %v388
      %v402 = vcombine.low %v372, %v372
      %403 = vrot.lane.b32.xlu0 %v402, 110
      %v404 = vpop.permute.xlu0 %403
      %405 = vrot.lane.b32.xlu0 %v372, 110
      %v406 = vpop.permute.xlu0 %405
      %407 = vrot.lane.b32.xlu0 %v381, 110
      %v408 = vpop.permute.xlu0 %407
      %vm409 = vcmask 900096
      %v410 = vsel %vm409, %v404, %v406
      %v411 = vsel %vm409, %v406, %v408
      %vm416 = vcmask 1048438
      %417 = vst.msk [vmem:[#allocation2] sm:$0xc0] %vm416, %v404
      %418 = vst [vmem:[#allocation2 + $0x8] sm:$0xc0] %v410
      %419 = vst [vmem:[#allocation2 + $0x10] sm:$0xc0] %v411
      %vm420 = vcmask 408582
      %421 = vst.msk [vmem:[#allocation2 + $0x18] sm:$0xc0] %vm420, %v408
      %422 = vst [vmem:[#allocation3] sm:$0xff] 0
      %vm423 = vcmask 1047808
      %424 = vst.msk [vmem:[#allocation3 + $0x18] sm:$0xff] %vm423, 0
      %vm425 = vcmask 261120
      %426 = vst.msk [vmem:[#allocation3 + $0x20] sm:$0xff] %vm425, 0
      %v427 = vld [vmem:[#allocation2 + $0x8] sm:$0xff]
      %v428 = vld [vmem:[#allocation2 + $0x10] sm:$0xff]
      %v429 = vld [vmem:[#allocation2 + $0x18] sm:$0xff]
      %v430 = vld [vmem:[%s1] sm:$0x3]
      %vm431 = vcmask 130048
      %v433 = vsel %vm431, %v430, 0
      %435 = vmatprep.subr.bf16.mxu0 %v428
      %436 = vmatpush1.bf16.msra.mxu0 %v427
      %437 = vmatprep.subr.bf16.mxu0 0
      %438 = vmatpush1.bf16.msra.mxu0 0
      %439 = vmatprep.subr.bf16.mxu0 0
      %440 = vmatpush1.bf16.msra.mxu0 0
      %441 = vmatprep.subr.bf16.mxu0 0
      %442 = vmatpush1.bf16.msra.mxu0 0
      %443 = vmatprep.subr.bf16.mxu0 0
      %444 = vmatpush1.bf16.msra.mxu0 0
      %445 = vmatprep.subr.bf16.mxu0 0
      %446 = vmatpush1.bf16.msra.mxu0 0
      %447 = vmatprep.subr.bf16.mxu0 0
      %448 = vmatpush1.bf16.msra.mxu0 0
      %449 = vmatprep.subr.bf16.mxu0 0
      %450 = vmatpush1.bf16.msra.mxu0 0
      %451 = vmatprep.subr.bf16.mxu0 0
      %452 = vmatpush1.bf16.msra.mxu0 0
      %453 = vmatprep.subr.bf16.mxu0 0
      %454 = vmatpush1.bf16.msra.mxu0 0
      %455 = vmatprep.subr.bf16.mxu0 0
      %456 = vmatpush1.bf16.msra.mxu0 0
      %457 = vmatprep.subr.bf16.mxu0 0
      %458 = vmatpush1.bf16.msra.mxu0 0
      %459 = vmatprep.subr.bf16.mxu0 0
      %460 = vmatpush1.bf16.msra.mxu0 0
      %461 = vmatprep.subr.bf16.mxu0 0
      %462 = vmatpush1.bf16.msra.mxu0 0
      %463 = vmatprep.subr.bf16.mxu0 0
      %464 = vmatpush1.bf16.msra.mxu0 0
      %465 = vmatprep.subr.bf16.mxu0 0
      %466 = vmatpush1.bf16.msra.mxu0 0
      %467 = vmatprep.mubr.bf16.mxu0 0
      %468 = vmatmul.mubr.bf16.gmra.mrb[0].mxu0 %v433
      %v469 = vpop.f32.mrb[0].mxu0
      %v470 = vadd.f32 %v312, %v469
      %v471 = vpop.f32.mrb[0].mxu0
      %v472 = vadd.f32 %v312, %v471
      %v473 = vpop.f32.mrb[0].mxu0
      %v474 = vpop.f32.mrb[0].mxu0
      %475 = vdwg.mxu0
      %476 = vmatprep.subr.bf16.mxu0 0
      %477 = vmatpush1.bf16.msra.mxu0 %v429
      %478 = vmatprep.subr.bf16.mxu0 0
      %479 = vmatpush1.bf16.msra.mxu0 0
      %480 = vmatprep.subr.bf16.mxu0 0
      %481 = vmatpush1.bf16.msra.mxu0 0
      %482 = vmatprep.subr.bf16.mxu0 0
      %483 = vmatpush1.bf16.msra.mxu0 0
      %484 = vmatprep.subr.bf16.mxu0 0
      %485 = vmatpush1.bf16.msra.mxu0 0
      %486 = vmatprep.subr.bf16.mxu0 0
      %487 = vmatpush1.bf16.msra.mxu0 0
      %488 = vmatprep.subr.bf16.mxu0 0
      %489 = vmatpush1.bf16.msra.mxu0 0
      %490 = vmatprep.subr.bf16.mxu0 0
      %491 = vmatpush1.bf16.msra.mxu0 0
      %492 = vmatprep.subr.bf16.mxu0 0
      %493 = vmatpush1.bf16.msra.mxu0 0
      %494 = vmatprep.subr.bf16.mxu0 0
      %495 = vmatpush1.bf16.msra.mxu0 0
      %496 = vmatprep.subr.bf16.mxu0 0
      %497 = vmatpush1.bf16.msra.mxu0 0
      %498 = vmatprep.subr.bf16.mxu0 0
      %499 = vmatpush1.bf16.msra.mxu0 0
      %500 = vmatprep.subr.bf16.mxu0 0
      %501 = vmatpush1.bf16.msra.mxu0 0
      %502 = vmatprep.subr.bf16.mxu0 0
      %503 = vmatpush1.bf16.msra.mxu0 0
      %504 = vmatprep.subr.bf16.mxu0 0
      %505 = vmatpush1.bf16.msra.mxu0 0
      %506 = vmatprep.subr.bf16.mxu0 0
      %507 = vmatpush1.bf16.msra.mxu0 0
      %508 = vmatprep.mubr.bf16.mxu0 0
      %509 = vmatmul.mubr.bf16.gmra.mrb[0].mxu0 %v433
      %v510 = vpop.f32.mrb[0].mxu0
      %v511 = vadd.f32 %v312, %v510
      %v512 = vpop.f32.mrb[0].mxu0
      %v513 = vpop.f32.mrb[0].mxu0
      %v514 = vpop.f32.mrb[0].mxu0
      %515 = vdwg.mxu0
      %v517 = vlaneseq
      %v518 = vshrl.u32 %v517, 7
      %v519 = vsub.s32 0, %v518
      %v520 = vrot.slane %v307, %v519
      %v521 = vlaneseq
      %v522 = vshrl.u32 %v521, 7
      %v523 = vsub.s32 1, %v522
      %v524 = vrot.slane %v307, %v523
      %v525 = vlaneseq
      %v526 = vshrl.u32 %v525, 7
      %v527 = vsub.s32 2, %v526
      %v528 = vrot.slane %v307, %v527
      %v532 = vmul.f32 %v470, %v520
      %v533 = vmul.f32 %v472, %v524
      %v534 = vmul.f32 %v511, %v528
      %v535 = vpack.c.bf16 %v532, %v532
      %v536 = vpack.c.bf16 %v533, %v533
      %v537 = vpack.c.bf16 %v534, %v534
      %538 = vst [vmem:[#allocation3 + $0x8] sm:$0x3] %v535
      %539 = vst [vmem:[#allocation3 + $0x10] sm:$0x3] %v536
      %vm540 = vcmask 254976
      %541 = vst.msk [vmem:[#allocation3 + $0x18] sm:$0x3] %vm540, %v537
      %v542 = vld [vmem:[#allocation2 + $0x8] sm:$0xff]
      %v543 = vld [vmem:[#allocation2 + $0x10] sm:$0xff]
      %v544 = vld [vmem:[#allocation2 + $0x18] sm:$0xff]
      %s545 = scalar_lea.vmem %s1, 2
      %v546 = vld [vmem:[%s545] sm:$0x3]
      %550 = vrot.lane.b32.xlu0 %v542, 127
      %v551 = vpop.permute.xlu0 %550
      %552 = vrot.lane.b32.xlu0 %v543, 127
      %v553 = vpop.permute.xlu0 %552
      %554 = vrot.lane.b32.xlu0 %v544, 127
      %v555 = vpop.permute.xlu0 %554
      %vm556 = vcmask 1039360
      %v557 = vsel %vm556, %v551, %v553
      %v558 = vsel %vm556, %v553, %v555
      %v563 = vsel %vm431, %v546, 0
      %565 = vmatprep.subr.bf16.mxu0 %v558
      %566 = vmatpush1.bf16.msra.mxu0 %v557
      %567 = vmatprep.subr.bf16.mxu0 0
      %568 = vmatpush1.bf16.msra.mxu0 0
      %569 = vmatprep.subr.bf16.mxu0 0
      %570 = vmatpush1.bf16.msra.mxu0 0
      %571 = vmatprep.subr.bf16.mxu0 0
      %572 = vmatpush1.bf16.msra.mxu0 0
      %573 = vmatprep.subr.bf16.mxu0 0
      %574 = vmatpush1.bf16.msra.mxu0 0
      %575 = vmatprep.subr.bf16.mxu0 0
      %576 = vmatpush1.bf16.msra.mxu0 0
      %577 = vmatprep.subr.bf16.mxu0 0
      %578 = vmatpush1.bf16.msra.mxu0 0
      %579 = vmatprep.subr.bf16.mxu0 0
      %580 = vmatpush1.bf16.msra.mxu0 0
      %581 = vmatprep.subr.bf16.mxu0 0
      %582 = vmatpush1.bf16.msra.mxu0 0
      %583 = vmatprep.subr.bf16.mxu0 0
      %584 = vmatpush1.bf16.msra.mxu0 0
      %585 = vmatprep.subr.bf16.mxu0 0
      %586 = vmatpush1.bf16.msra.mxu0 0
      %587 = vmatprep.subr.bf16.mxu0 0
      %588 = vmatpush1.bf16.msra.mxu0 0
      %589 = vmatprep.subr.bf16.mxu0 0
      %590 = vmatpush1.bf16.msra.mxu0 0
      %591 = vmatprep.subr.bf16.mxu0 0
      %592 = vmatpush1.bf16.msra.mxu0 0
      %593 = vmatprep.subr.bf16.mxu0 0
      %594 = vmatpush1.bf16.msra.mxu0 0
      %595 = vmatprep.subr.bf16.mxu0 0
      %596 = vmatpush1.bf16.msra.mxu0 0
      %597 = vmatprep.mubr.bf16.mxu0 0
      %598 = vmatmul.mubr.bf16.gmra.mrb[0].mxu0 %v563
      %v599 = vpop.f32.mrb[0].mxu0
      %v600 = vadd.f32 %v312, %v599
      %v601 = vpop.f32.mrb[0].mxu0
      %v602 = vadd.f32 %v312, %v601
      %v603 = vpop.f32.mrb[0].mxu0
      %v604 = vpop.f32.mrb[0].mxu0
      %605 = vdwg.mxu0
      %606 = vmatprep.subr.bf16.mxu0 0
      %607 = vmatpush1.bf16.msra.mxu0 %v555
      %608 = vmatprep.subr.bf16.mxu0 0
      %609 = vmatpush1.bf16.msra.mxu0 0
      %610 = vmatprep.subr.bf16.mxu0 0
      %611 = vmatpush1.bf16.msra.mxu0 0
      %612 = vmatprep.subr.bf16.mxu0 0
      %613 = vmatpush1.bf16.msra.mxu0 0
      %614 = vmatprep.subr.bf16.mxu0 0
      %615 = vmatpush1.bf16.msra.mxu0 0
      %616 = vmatprep.subr.bf16.mxu0 0
      %617 = vmatpush1.bf16.msra.mxu0 0
      %618 = vmatprep.subr.bf16.mxu0 0
      %619 = vmatpush1.bf16.msra.mxu0 0
      %620 = vmatprep.subr.bf16.mxu0 0
      %621 = vmatpush1.bf16.msra.mxu0 0
      %622 = vmatprep.subr.bf16.mxu0 0
      %623 = vmatpush1.bf16.msra.mxu0 0
      %624 = vmatprep.subr.bf16.mxu0 0
      %625 = vmatpush1.bf16.msra.mxu0 0
      %626 = vmatprep.subr.bf16.mxu0 0
      %627 = vmatpush1.bf16.msra.mxu0 0
      %628 = vmatprep.subr.bf16.mxu0 0
      %629 = vmatpush1.bf16.msra.mxu0 0
      %630 = vmatprep.subr.bf16.mxu0 0
      %631 = vmatpush1.bf16.msra.mxu0 0
      %632 = vmatprep.subr.bf16.mxu0 0
      %633 = vmatpush1.bf16.msra.mxu0 0
      %634 = vmatprep.subr.bf16.mxu0 0
      %635 = vmatpush1.bf16.msra.mxu0 0
      %636 = vmatprep.subr.bf16.mxu0 0
      %637 = vmatpush1.bf16.msra.mxu0 0
      %638 = vmatprep.mubr.bf16.mxu0 0
      %639 = vmatmul.mubr.bf16.gmra.mrb[0].mxu0 %v563
      %v640 = vpop.f32.mrb[0].mxu0
      %v641 = vadd.f32 %v312, %v640
      %v642 = vpop.f32.mrb[0].mxu0
      %v643 = vpop.f32.mrb[0].mxu0
      %v644 = vpop.f32.mrb[0].mxu0
      %645 = vdwg.mxu0
      %v646 = vmul.f32 %v600, %v520
      %v647 = vmul.f32 %v602, %v524
      %v648 = vmul.f32 %v641, %v528
      %v649 = vpack.c.bf16 %v646, %v646
      %v650 = vpack.c.bf16 %v647, %v647
      %v651 = vpack.c.bf16 %v648, %v648
      %v655 = vrot.slane %v649, 6
      %v656 = vrot.slane %v650, 6
      %v657 = vrot.slane %v651, 6
      %661 = vst [vmem:[#allocation3 + $0x8] sm:$0xc] %v655
      %662 = vst [vmem:[#allocation3 + $0x10] sm:$0xc] %v656
      %vm663 = vcmask 257026
      %664 = vst.msk [vmem:[#allocation3 + $0x18] sm:$0xc] %vm663, %v657
      %v665 = vld [vmem:[#allocation2 + $0x8] sm:$0xff]
      %v666 = vld [vmem:[#allocation2 + $0x10] sm:$0xff]
      %v667 = vld [vmem:[#allocation2 + $0x18] sm:$0xff]
      %s668 = scalar_lea.vmem %s1, 4
      %v669 = vld [vmem:[%s668] sm:$0x3]
      %673 = vrot.lane.b32.xlu0 %v665, 110
      %v674 = vpop.permute.xlu0 %673
      %675 = vrot.lane.b32.xlu0 %v666, 110
      %v676 = vpop.permute.xlu0 %675
      %677 = vrot.lane.b32.xlu0 %v667, 110
      %v678 = vpop.permute.xlu0 %677
      %v679 = vsel %vm409, %v674, %v676
      %v680 = vsel %vm409, %v676, %v678
      %v685 = vsel %vm431, %v669, 0
      %687 = vmatprep.subr.bf16.mxu0 %v680
      %688 = vmatpush1.bf16.msra.mxu0 %v679
      %689 = vmatprep.subr.bf16.mxu0 0
      %690 = vmatpush1.bf16.msra.mxu0 0
      %691 = vmatprep.subr.bf16.mxu0 0
      %692 = vmatpush1.bf16.msra.mxu0 0
      %693 = vmatprep.subr.bf16.mxu0 0
      %694 = vmatpush1.bf16.msra.mxu0 0
      %695 = vmatprep.subr.bf16.mxu0 0
      %696 = vmatpush1.bf16.msra.mxu0 0
      %697 = vmatprep.subr.bf16.mxu0 0
      %698 = vmatpush1.bf16.msra.mxu0 0
      %699 = vmatprep.subr.bf16.mxu0 0
      %700 = vmatpush1.bf16.msra.mxu0 0
      %701 = vmatprep.subr.bf16.mxu0 0
      %702 = vmatpush1.bf16.msra.mxu0 0
      %703 = vmatprep.subr.bf16.mxu0 0
      %704 = vmatpush1.bf16.msra.mxu0 0
      %705 = vmatprep.subr.bf16.mxu0 0
      %706 = vmatpush1.bf16.msra.mxu0 0
      %707 = vmatprep.subr.bf16.mxu0 0
      %708 = vmatpush1.bf16.msra.mxu0 0
      %709 = vmatprep.subr.bf16.mxu0 0
      %710 = vmatpush1.bf16.msra.mxu0 0
      %711 = vmatprep.subr.bf16.mxu0 0
      %712 = vmatpush1.bf16.msra.mxu0 0
      %713 = vmatprep.subr.bf16.mxu0 0
      %714 = vmatpush1.bf16.msra.mxu0 0
      %715 = vmatprep.subr.bf16.mxu0 0
      %716 = vmatpush1.bf16.msra.mxu0 0
      %717 = vmatprep.subr.bf16.mxu0 0
      %718 = vmatpush1.bf16.msra.mxu0 0
      %719 = vmatprep.mubr.bf16.mxu0 0
      %720 = vmatmul.mubr.bf16.gmra.mrb[0].mxu0 %v685
      %v721 = vpop.f32.mrb[0].mxu0
      %v722 = vadd.f32 %v312, %v721
      %v723 = vpop.f32.mrb[0].mxu0
      %v724 = vadd.f32 %v312, %v723
      %v725 = vpop.f32.mrb[0].mxu0
      %v726 = vpop.f32.mrb[0].mxu0
      %727 = vdwg.mxu0
      %728 = vmatprep.subr.bf16.mxu0 0
      %729 = vmatpush1.bf16.msra.mxu0 %v678
      %730 = vmatprep.subr.bf16.mxu0 0
      %731 = vmatpush1.bf16.msra.mxu0 0
      %732 = vmatprep.subr.bf16.mxu0 0
      %733 = vmatpush1.bf16.msra.mxu0 0
      %734 = vmatprep.subr.bf16.mxu0 0
      %735 = vmatpush1.bf16.msra.mxu0 0
      %736 = vmatprep.subr.bf16.mxu0 0
      %737 = vmatpush1.bf16.msra.mxu0 0
      %738 = vmatprep.subr.bf16.mxu0 0
      %739 = vmatpush1.bf16.msra.mxu0 0
      %740 = vmatprep.subr.bf16.mxu0 0
      %741 = vmatpush1.bf16.msra.mxu0 0
      %742 = vmatprep.subr.bf16.mxu0 0
      %743 = vmatpush1.bf16.msra.mxu0 0
      %744 = vmatprep.subr.bf16.mxu0 0
      %745 = vmatpush1.bf16.msra.mxu0 0
      %746 = vmatprep.subr.bf16.mxu0 0
      %747 = vmatpush1.bf16.msra.mxu0 0
      %748 = vmatprep.subr.bf16.mxu0 0
      %749 = vmatpush1.bf16.msra.mxu0 0
      %750 = vmatprep.subr.bf16.mxu0 0
      %751 = vmatpush1.bf16.msra.mxu0 0
      %752 = vmatprep.subr.bf16.mxu0 0
      %753 = vmatpush1.bf16.msra.mxu0 0
      %754 = vmatprep.subr.bf16.mxu0 0
      %755 = vmatpush1.bf16.msra.mxu0 0
      %756 = vmatprep.subr.bf16.mxu0 0
      %757 = vmatpush1.bf16.msra.mxu0 0
      %758 = vmatprep.subr.bf16.mxu0 0
      %759 = vmatpush1.bf16.msra.mxu0 0
      %760 = vmatprep.mubr.bf16.mxu0 0
      %761 = vmatmul.mubr.bf16.gmra.mrb[0].mxu0 %v685
      %v762 = vpop.f32.mrb[0].mxu0
      %v763 = vadd.f32 %v312, %v762
      %v764 = vpop.f32.mrb[0].mxu0
      %v765 = vpop.f32.mrb[0].mxu0
      %v766 = vpop.f32.mrb[0].mxu0
      %767 = vdwg.mxu0
      %v768 = vmul.f32 %v722, %v520
      %v769 = vmul.f32 %v724, %v524
      %v770 = vmul.f32 %v763, %v528
      %v771 = vpack.c.bf16 %v768, %v768
      %v772 = vpack.c.bf16 %v769, %v769
      %v773 = vpack.c.bf16 %v770, %v770
      %v777 = vrot.slane %v771, 4
      %v778 = vrot.slane %v772, 4
      %v779 = vrot.slane %v773, 4
      %783 = vst [vmem:[#allocation3 + $0x8] sm:$0x30] %v777
      %784 = vst [vmem:[#allocation3 + $0x10] sm:$0x30] %v778
      %vm785 = vcmask 259076
      %786 = vst.msk [vmem:[#allocation3 + $0x18] sm:$0x30] %vm785, %v779
      %v787 = vld [vmem:[#allocation2 + $0x8] sm:$0xff]
      %v788 = vld [vmem:[#allocation2 + $0x10] sm:$0xff]
      %v789 = vld [vmem:[#allocation2 + $0x18] sm:$0xff]
      %s790 = scalar_lea.vmem %s1, 6
      %v791 = vld [vmem:[%s790] sm:$0x3]
      %795 = vrot.lane.b32.xlu0 %v787, 109
      %v796 = vpop.permute.xlu0 %795
      %797 = vrot.lane.b32.xlu0 %v788, 109
      %v798 = vpop.permute.xlu0 %797
      %799 = vrot.lane.b32.xlu0 %v789, 109
      %v800 = vpop.permute.xlu0 %799
      %vm801 = vcmask 891904
      %v802 = vsel %vm801, %v796, %v798
      %v803 = vsel %vm801, %v798, %v800
      %v808 = vsel %vm431, %v791, 0
      %810 = vmatprep.subr.bf16.mxu0 %v803
      %811 = vmatpush1.bf16.msra.mxu0 %v802
      %812 = vmatprep.subr.bf16.mxu0 0
      %813 = vmatpush1.bf16.msra.mxu0 0
      %814 = vmatprep.subr.bf16.mxu0 0
      %815 = vmatpush1.bf16.msra.mxu0 0
      %816 = vmatprep.subr.bf16.mxu0 0
      %817 = vmatpush1.bf16.msra.mxu0 0
      %818 = vmatprep.subr.bf16.mxu0 0
      %819 = vmatpush1.bf16.msra.mxu0 0
      %820 = vmatprep.subr.bf16.mxu0 0
      %821 = vmatpush1.bf16.msra.mxu0 0
      %822 = vmatprep.subr.bf16.mxu0 0
      %823 = vmatpush1.bf16.msra.mxu0 0
      %824 = vmatprep.subr.bf16.mxu0 0
      %825 = vmatpush1.bf16.msra.mxu0 0
      %826 = vmatprep.subr.bf16.mxu0 0
      %827 = vmatpush1.bf16.msra.mxu0 0
      %828 = vmatprep.subr.bf16.mxu0 0
      %829 = vmatpush1.bf16.msra.mxu0 0
      %830 = vmatprep.subr.bf16.mxu0 0
      %831 = vmatpush1.bf16.msra.mxu0 0
      %832 = vmatprep.subr.bf16.mxu0 0
      %833 = vmatpush1.bf16.msra.mxu0 0
      %834 = vmatprep.subr.bf16.mxu0 0
      %835 = vmatpush1.bf16.msra.mxu0 0
      %836 = vmatprep.subr.bf16.mxu0 0
      %837 = vmatpush1.bf16.msra.mxu0 0
      %838 = vmatprep.subr.bf16.mxu0 0
      %839 = vmatpush1.bf16.msra.mxu0 0
      %840 = vmatprep.subr.bf16.mxu0 0
      %841 = vmatpush1.bf16.msra.mxu0 0
      %842 = vmatprep.mubr.bf16.mxu0 0
      %843 = vmatmul.mubr.bf16.gmra.mrb[0].mxu0 %v808
      %v844 = vpop.f32.mrb[0].mxu0
      %v845 = vadd.f32 %v312, %v844
      %v846 = vpop.f32.mrb[0].mxu0
      %v847 = vadd.f32 %v312, %v846
      %v848 = vpop.f32.mrb[0].mxu0
      %v849 = vpop.f32.mrb[0].mxu0
      %850 = vdwg.mxu0
      %851 = vmatprep.subr.bf16.mxu0 0
      %852 = vmatpush1.bf16.msra.mxu0 %v800
      %853 = vmatprep.subr.bf16.mxu0 0
      %854 = vmatpush1.bf16.msra.mxu0 0
      %855 = vmatprep.subr.bf16.mxu0 0
      %856 = vmatpush1.bf16.msra.mxu0 0
      %857 = vmatprep.subr.bf16.mxu0 0
      %858 = vmatpush1.bf16.msra.mxu0 0
      %859 = vmatprep.subr.bf16.mxu0 0
      %860 = vmatpush1.bf16.msra.mxu0 0
      %861 = vmatprep.subr.bf16.mxu0 0
      %862 = vmatpush1.bf16.msra.mxu0 0
      %863 = vmatprep.subr.bf16.mxu0 0
      %864 = vmatpush1.bf16.msra.mxu0 0
      %865 = vmatprep.subr.bf16.mxu0 0
      %866 = vmatpush1.bf16.msra.mxu0 0
      %867 = vmatprep.subr.bf16.mxu0 0
      %868 = vmatpush1.bf16.msra.mxu0 0
      %869 = vmatprep.subr.bf16.mxu0 0
      %870 = vmatpush1.bf16.msra.mxu0 0
      %871 = vmatprep.subr.bf16.mxu0 0
      %872 = vmatpush1.bf16.msra.mxu0 0
      %873 = vmatprep.subr.bf16.mxu0 0
      %874 = vmatpush1.bf16.msra.mxu0 0
      %875 = vmatprep.subr.bf16.mxu0 0
      %876 = vmatpush1.bf16.msra.mxu0 0
      %877 = vmatprep.subr.bf16.mxu0 0
      %878 = vmatpush1.bf16.msra.mxu0 0
      %879 = vmatprep.subr.bf16.mxu0 0
      %880 = vmatpush1.bf16.msra.mxu0 0
      %881 = vmatprep.subr.bf16.mxu0 0
      %882 = vmatpush1.bf16.msra.mxu0 0
      %883 = vmatprep.mubr.bf16.mxu0 0
      %884 = vmatmul.mubr.bf16.gmra.mrb[0].mxu0 %v808
      %v885 = vpop.f32.mrb[0].mxu0
      %v886 = vadd.f32 %v312, %v885
      %v887 = vpop.f32.mrb[0].mxu0
      %v888 = vpop.f32.mrb[0].mxu0
      %v889 = vpop.f32.mrb[0].mxu0
      %890 = vdwg.mxu0
      %v891 = vmul.f32 %v845, %v520
      %v892 = vmul.f32 %v847, %v524
      %v893 = vmul.f32 %v886, %v528
      %v894 = vpack.c.bf16 %v891, %v891
      %v895 = vpack.c.bf16 %v892, %v892
      %v896 = vpack.c.bf16 %v893, %v893
      %v900 = vrot.slane %v894, 2
      %v901 = vrot.slane %v895, 2
      %v902 = vrot.slane %v896, 2
      %906 = vst [vmem:[#allocation3 + $0x8] sm:$0xc0] %v900
      %907 = vst [vmem:[#allocation3 + $0x10] sm:$0xc0] %v901
      %vm908 = vcmask 261126
      %909 = vst.msk [vmem:[#allocation3 + $0x18] sm:$0xc0] %vm908, %v902
      %v910 = vld [vmem:[#allocation3] sm:$0xff]
      %v911 = vld [vmem:[#allocation3 + $0x8] sm:$0xff]
      %v912 = vld [vmem:[#allocation3 + $0x10] sm:$0xff]
      %v913 = vld [vmem:[#allocation3 + $0x18] sm:$0xff]
      %vm914 = vcmask 1048424
      %915 = vst.msk [vmem:[#allocation4] sm:$0xff] %vm914, %v910
      %916 = vst [vmem:[#allocation4 + $0x8] sm:$0xff] %v911
      %917 = vst [vmem:[#allocation4 + $0x10] sm:$0xff] %v912
      %918 = vst.msk [vmem:[#allocation4 + $0x18] sm:$0xff] %vm425, %v913
      %v919 = vld [vmem:[#allocation3] sm:$0xff]
      %v920 = vld [vmem:[#allocation3 + $0x8] sm:$0xff]
      %v921 = vld [vmem:[#allocation3 + $0x10] sm:$0xff]
      %v922 = vld [vmem:[#allocation3 + $0x18] sm:$0xff]
      %927 = vrot.lane.b32.xlu0 %v919, 127
      %v928 = vpop.permute.xlu0 %927
      %929 = vrot.lane.b32.xlu0 %v920, 127
      %v930 = vpop.permute.xlu0 %929
      %931 = vrot.lane.b32.xlu0 %v921, 127
      %v932 = vpop.permute.xlu0 %931
      %933 = vrot.lane.b32.xlu0 %v922, 127
      %v934 = vpop.permute.xlu0 %933
      %v935 = vsel %vm556, %v928, %v930
      %v936 = vsel %vm556, %v930, %v932
      %v937 = vsel %vm556, %v932, %v934
      %942 = vst.msk [vmem:[#allocation4 + $0x20] sm:$0xff] %vm914, %v935
      %943 = vst [vmem:[#allocation4 + $0x28] sm:$0xff] %v936
      %944 = vst [vmem:[#allocation4 + $0x30] sm:$0xff] %v937
      %945 = vst.msk [vmem:[#allocation4 + $0x38] sm:$0xff] %vm425, %v934
      %v946 = vld [vmem:[#allocation3] sm:$0xff]
      %v947 = vld [vmem:[#allocation3 + $0x8] sm:$0xff]
      %v948 = vld [vmem:[#allocation3 + $0x10] sm:$0xff]
      %v949 = vld [vmem:[#allocation3 + $0x18] sm:$0xff]
      %954 = vrot.lane.b32.xlu0 %v946, 110
      %v955 = vpop.permute.xlu0 %954
      %956 = vrot.lane.b32.xlu0 %v947, 110
      %v957 = vpop.permute.xlu0 %956
      %958 = vrot.lane.b32.xlu0 %v948, 110
      %v959 = vpop.permute.xlu0 %958
      %960 = vrot.lane.b32.xlu0 %v949, 110
      %v961 = vpop.permute.xlu0 %960
      %v962 = vsel %vm409, %v955, %v957
      %v963 = vsel %vm409, %v957, %v959
      %v964 = vsel %vm409, %v959, %v961
      %969 = vst.msk [vmem:[#allocation4 + $0x40] sm:$0xff] %vm914, %v962
      %970 = vst [vmem:[#allocation4 + $0x48] sm:$0xff] %v963
      %971 = vst [vmem:[#allocation4 + $0x50] sm:$0xff] %v964
      %972 = vst.msk [vmem:[#allocation4 + $0x58] sm:$0xff] %vm425, %v961
      %v973 = vld [vmem:[#allocation3 + $0x8] sm:$0xff]
      %v974 = vld [vmem:[#allocation3 + $0x10] sm:$0xff]
      %v975 = vld [vmem:[#allocation3 + $0x18] sm:$0xff]
      %979 = vrot.lane.b32.xlu0 %v973, 109
      %v980 = vpop.permute.xlu0 %979
      %981 = vrot.lane.b32.xlu0 %v974, 109
      %v982 = vpop.permute.xlu0 %981
      %983 = vrot.lane.b32.xlu0 %v975, 109
      %v984 = vpop.permute.xlu0 %983
      %v985 = vsel %vm801, %v980, %v982
      %v986 = vsel %vm801, %v982, %v984
      %991 = vst.msk [vmem:[#allocation4 + $0x60] sm:$0xff] %vm914, %v980
      %992 = vst [vmem:[#allocation4 + $0x68] sm:$0xff] %v985
      %993 = vst [vmem:[#allocation4 + $0x70] sm:$0xff] %v986
      %994 = vst.msk [vmem:[#allocation4 + $0x78] sm:$0xff] %vm425, %v984
      %995 = vst [vmem:[#allocation5] sm:$0xff] 0
      %996 = vst.msk [vmem:[#allocation5 + $0x18] sm:$0xff] %vm423, 0
      %997 = vst.msk [vmem:[#allocation5 + $0x20] sm:$0xff] %vm425, 0
      %v998 = vld [vmem:[#allocation4] sm:$0xff]
      %v999 = vld [vmem:[#allocation4 + $0x8] sm:$0xff]
      %v1000 = vld [vmem:[#allocation4 + $0x10] sm:$0xff]
      %v1001 = vld [vmem:[#allocation4 + $0x18] sm:$0xff]
      %v1002 = vld [vmem:[#allocation4 + $0x20] sm:$0xff]
      %v1003 = vld [vmem:[#allocation4 + $0x28] sm:$0xff]
      %v1004 = vld [vmem:[#allocation4 + $0x30] sm:$0xff]
      %v1005 = vld [vmem:[#allocation4 + $0x38] sm:$0xff]
      %v1006 = vld [vmem:[#allocation4 + $0x40] sm:$0xff]
      %v1007 = vld [vmem:[#allocation4 + $0x48] sm:$0xff]
      %v1008 = vld [vmem:[#allocation4 + $0x50] sm:$0xff]
      %v1009 = vld [vmem:[#allocation4 + $0x58] sm:$0xff]
      %v1010 = vld [vmem:[#allocation4 + $0x60] sm:$0xff]
      %v1011 = vld [vmem:[#allocation4 + $0x68] sm:$0xff]
      %v1012 = vld [vmem:[#allocation4 + $0x70] sm:$0xff]
      %v1013 = vld [vmem:[#allocation4 + $0x78] sm:$0xff]
      %v1014 = vld [vmem:[%s3] sm:$0x3]
      %1031 = vrot.lane.b32.xlu0 %v998, 19
      %v1032 = vpop.permute.xlu0 %1031
      %1033 = vrot.lane.b32.xlu0 %v999, 19
      %v1034 = vpop.permute.xlu0 %1033
      %1035 = vrot.lane.b32.xlu0 %v1000, 19
      %v1036 = vpop.permute.xlu0 %1035
      %1037 = vrot.lane.b32.xlu0 %v1001, 19
      %v1038 = vpop.permute.xlu0 %1037
      %1039 = vrot.lane.b32.xlu0 %v1002, 19
      %v1040 = vpop.permute.xlu0 %1039
      %1041 = vrot.lane.b32.xlu0 %v1003, 19
      %v1042 = vpop.permute.xlu0 %1041
      %1043 = vrot.lane.b32.xlu0 %v1004, 19
      %v1044 = vpop.permute.xlu0 %1043
      %1045 = vrot.lane.b32.xlu0 %v1005, 19
      %v1046 = vpop.permute.xlu0 %1045
      %1047 = vrot.lane.b32.xlu0 %v1006, 19
      %v1048 = vpop.permute.xlu0 %1047
      %1049 = vrot.lane.b32.xlu0 %v1007, 19
      %v1050 = vpop.permute.xlu0 %1049
      %1051 = vrot.lane.b32.xlu0 %v1008, 19
      %v1052 = vpop.permute.xlu0 %1051
      %1053 = vrot.lane.b32.xlu0 %v1009, 19
      %v1054 = vpop.permute.xlu0 %1053
      %1055 = vrot.lane.b32.xlu0 %v1010, 19
      %v1056 = vpop.permute.xlu0 %1055
      %1057 = vrot.lane.b32.xlu0 %v1011, 19
      %v1058 = vpop.permute.xlu0 %1057
      %1059 = vrot.lane.b32.xlu0 %v1012, 19
      %v1060 = vpop.permute.xlu0 %1059
      %1061 = vrot.lane.b32.xlu0 %v1013, 19
      %v1062 = vpop.permute.xlu0 %1061
      %vm1063 = vcmask 154624
      %v1064 = vsel %vm1063, %v1032, %v1034
      %v1065 = vsel %vm1063, %v1034, %v1036
      %v1066 = vsel %vm1063, %v1036, %v1038
      %v1067 = vsel %vm1063, %v1040, %v1042
      %v1068 = vsel %vm1063, %v1042, %v1044
      %v1069 = vsel %vm1063, %v1044, %v1046
      %v1070 = vsel %vm1063, %v1048, %v1050
      %v1071 = vsel %vm1063, %v1050, %v1052
      %v1072 = vsel %vm1063, %v1052, %v1054
      %v1073 = vsel %vm1063, %v1056, %v1058
      %v1074 = vsel %vm1063, %v1058, %v1060
      %v1075 = vsel %vm1063, %v1060, %v1062
      %vm1088 = vcmask 523264
      %v1090 = vsel %vm1088, %v1014, 0
      %1092 = vmatprep.subr.bf16.mxu0 %v1065
      %1093 = vmatpush1.bf16.msra.mxu0 %v1064
      %1094 = vmatprep.subr.bf16.mxu0 %v1068
      %1095 = vmatpush1.bf16.msra.mxu0 %v1067
      %1096 = vmatprep.subr.bf16.mxu0 %v1071
      %1097 = vmatpush1.bf16.msra.mxu0 %v1070
      %1098 = vmatprep.subr.bf16.mxu0 %v1074
      %1099 = vmatpush1.bf16.msra.mxu0 %v1073
      %1100 = vmatprep.subr.bf16.mxu0 0
      %1101 = vmatpush1.bf16.msra.mxu0 0
      %1102 = vmatprep.subr.bf16.mxu0 0
      %1103 = vmatpush1.bf16.msra.mxu0 0
      %1104 = vmatprep.subr.bf16.mxu0 0
      %1105 = vmatpush1.bf16.msra.mxu0 0
      %1106 = vmatprep.subr.bf16.mxu0 0
      %1107 = vmatpush1.bf16.msra.mxu0 0
      %1108 = vmatprep.subr.bf16.mxu0 0
      %1109 = vmatpush1.bf16.msra.mxu0 0
      %1110 = vmatprep.subr.bf16.mxu0 0
      %1111 = vmatpush1.bf16.msra.mxu0 0
      %1112 = vmatprep.subr.bf16.mxu0 0
      %1113 = vmatpush1.bf16.msra.mxu0 0
      %1114 = vmatprep.subr.bf16.mxu0 0
      %1115 = vmatpush1.bf16.msra.mxu0 0
      %1116 = vmatprep.subr.bf16.mxu0 0
      %1117 = vmatpush1.bf16.msra.mxu0 0
      %1118 = vmatprep.subr.bf16.mxu0 0
      %1119 = vmatpush1.bf16.msra.mxu0 0
      %1120 = vmatprep.subr.bf16.mxu0 0
      %1121 = vmatpush1.bf16.msra.mxu0 0
      %1122 = vmatprep.subr.bf16.mxu0 0
      %1123 = vmatpush1.bf16.msra.mxu0 0
      %1124 = vmatprep.mubr.bf16.mxu0 0
      %1125 = vmatmul.mubr.bf16.gmra.mrb[0].mxu0 %v1090
      %v1126 = vpop.f32.mrb[0].mxu0
      %v1127 = vadd.f32 %v318, %v1126
      %v1128 = vpop.f32.mrb[0].mxu0
      %v1129 = vadd.f32 %v318, %v1128
      %v1130 = vpop.f32.mrb[0].mxu0
      %v1131 = vpop.f32.mrb[0].mxu0
      %1132 = vdwg.mxu0
      %1133 = vmatprep.subr.bf16.mxu0 0
      %1134 = vmatpush1.bf16.msra.mxu0 %v1066
      %1135 = vmatprep.subr.bf16.mxu0 0
      %1136 = vmatpush1.bf16.msra.mxu0 %v1069
      %1137 = vmatprep.subr.bf16.mxu0 0
      %1138 = vmatpush1.bf16.msra.mxu0 %v1072
      %1139 = vmatprep.subr.bf16.mxu0 0
      %1140 = vmatpush1.bf16.msra.mxu0 %v1075
      %1141 = vmatprep.subr.bf16.mxu0 0
      %1142 = vmatpush1.bf16.msra.mxu0 0
      %1143 = vmatprep.subr.bf16.mxu0 0
      %1144 = vmatpush1.bf16.msra.mxu0 0
      %1145 = vmatprep.subr.bf16.mxu0 0
      %1146 = vmatpush1.bf16.msra.mxu0 0
      %1147 = vmatprep.subr.bf16.mxu0 0
      %1148 = vmatpush1.bf16.msra.mxu0 0
      %1149 = vmatprep.subr.bf16.mxu0 0
      %1150 = vmatpush1.bf16.msra.mxu0 0
      %1151 = vmatprep.subr.bf16.mxu0 0
      %1152 = vmatpush1.bf16.msra.mxu0 0
      %1153 = vmatprep.subr.bf16.mxu0 0
      %1154 = vmatpush1.bf16.msra.mxu0 0
      %1155 = vmatprep.subr.bf16.mxu0 0
      %1156 = vmatpush1.bf16.msra.mxu0 0
      %1157 = vmatprep.subr.bf16.mxu0 0
      %1158 = vmatpush1.bf16.msra.mxu0 0
      %1159 = vmatprep.subr.bf16.mxu0 0
      %1160 = vmatpush1.bf16.msra.mxu0 0
      %1161 = vmatprep.subr.bf16.mxu0 0
      %1162 = vmatpush1.bf16.msra.mxu0 0
      %1163 = vmatprep.subr.bf16.mxu0 0
      %1164 = vmatpush1.bf16.msra.mxu0 0
      %1165 = vmatprep.mubr.bf16.mxu0 0
      %1166 = vmatmul.mubr.bf16.gmra.mrb[0].mxu0 %v1090
      %v1167 = vpop.f32.mrb[0].mxu0
      %v1168 = vadd.f32 %v318, %v1167
      %v1169 = vpop.f32.mrb[0].mxu0
      %v1170 = vpop.f32.mrb[0].mxu0
      %v1171 = vpop.f32.mrb[0].mxu0
      %1172 = vdwg.mxu0
      %v1173 = vmax.f32 %v1127, 0.0
      %v1174 = vmax.f32 %v1129, 0.0
      %v1175 = vmax.f32 %v1168, 0.0
      %v1176 = vmin.f32 %v1173, 6.0
      %v1177 = vmin.f32 %v1174, 6.0
      %v1178 = vmin.f32 %v1175, 6.0
      %v1179 = vmul.f32 %v1176, %v520
      %v1180 = vmul.f32 %v1177, %v524
      %v1181 = vmul.f32 %v1178, %v528
      %v1182 = vpack.c.bf16 %v1179, %v1179
      %v1183 = vpack.c.bf16 %v1180, %v1180
      %v1184 = vpack.c.bf16 %v1181, %v1181
      %1185 = vst [vmem:[#allocation5 + $0x8] sm:$0x3] %v1182
      %1186 = vst [vmem:[#allocation5 + $0x10] sm:$0x3] %v1183
      %1187 = vst.msk [vmem:[#allocation5 + $0x18] sm:$0x3] %vm540, %v1184
      %v1188 = vld [vmem:[#allocation4] sm:$0xff]
      %v1189 = vld [vmem:[#allocation4 + $0x8] sm:$0xff]
      %v1190 = vld [vmem:[#allocation4 + $0x10] sm:$0xff]
      %v1191 = vld [vmem:[#allocation4 + $0x18] sm:$0xff]
      %v1192 = vld [vmem:[#allocation4 + $0x20] sm:$0xff]
      %v1193 = vld [vmem:[#allocation4 + $0x28] sm:$0xff]
      %v1194 = vld [vmem:[#allocation4 + $0x30] sm:$0xff]
      %v1195 = vld [vmem:[#allocation4 + $0x38] sm:$0xff]
      %v1196 = vld [vmem:[#allocation4 + $0x40] sm:$0xff]
      %v1197 = vld [vmem:[#allocation4 + $0x48] sm:$0xff]
      %v1198 = vld [vmem:[#allocation4 + $0x50] sm:$0xff]
      %v1199 = vld [vmem:[#allocation4 + $0x58] sm:$0xff]
      %v1200 = vld [vmem:[#allocation4 + $0x60] sm:$0xff]
      %v1201 = vld [vmem:[#allocation4 + $0x68] sm:$0xff]
      %v1202 = vld [vmem:[#allocation4 + $0x70] sm:$0xff]
      %v1203 = vld [vmem:[#allocation4 + $0x78] sm:$0xff]
      %s1204 = scalar_lea.vmem %s3, 2
      %v1205 = vld [vmem:[%s1204] sm:$0x3]
      %1222 = vrot.lane.b32.xlu0 %v1188, 18
      %v1223 = vpop.permute.xlu0 %1222
      %1224 = vrot.lane.b32.xlu0 %v1189, 18
      %v1225 = vpop.permute.xlu0 %1224
      %1226 = vrot.lane.b32.xlu0 %v1190, 18
      %v1227 = vpop.permute.xlu0 %1226
      %1228 = vrot.lane.b32.xlu0 %v1191, 18
      %v1229 = vpop.permute.xlu0 %1228
      %1230 = vrot.lane.b32.xlu0 %v1192, 18
      %v1231 = vpop.permute.xlu0 %1230
      %1232 = vrot.lane.b32.xlu0 %v1193, 18
      %v1233 = vpop.permute.xlu0 %1232
      %1234 = vrot.lane.b32.xlu0 %v1194, 18
      %v1235 = vpop.permute.xlu0 %1234
      %1236 = vrot.lane.b32.xlu0 %v1195, 18
      %v1237 = vpop.permute.xlu0 %1236
      %1238 = vrot.lane.b32.xlu0 %v1196, 18
      %v1239 = vpop.permute.xlu0 %1238
      %1240 = vrot.lane.b32.xlu0 %v1197, 18
      %v1241 = vpop.permute.xlu0 %1240
      %1242 = vrot.lane.b32.xlu0 %v1198, 18
      %v1243 = vpop.permute.xlu0 %1242
      %1244 = vrot.lane.b32.xlu0 %v1199, 18
      %v1245 = vpop.permute.xlu0 %1244
      %1246 = vrot.lane.b32.xlu0 %v1200, 18
      %v1247 = vpop.permute.xlu0 %1246
      %1248 = vrot.lane.b32.xlu0 %v1201, 18
      %v1249 = vpop.permute.xlu0 %1248
      %1250 = vrot.lane.b32.xlu0 %v1202, 18
      %v1251 = vpop.permute.xlu0 %1250
      %1252 = vrot.lane.b32.xlu0 %v1203, 18
      %v1253 = vpop.permute.xlu0 %1252
      %vm1254 = vcmask 146432
      %v1255 = vsel %vm1254, %v1223, %v1225
      %v1256 = vsel %vm1254, %v1225, %v1227
      %v1257 = vsel %vm1254, %v1227, %v1229
      %v1258 = vsel %vm1254, %v1231, %v1233
      %v1259 = vsel %vm1254, %v1233, %v1235
      %v1260 = vsel %vm1254, %v1235, %v1237
      %v1261 = vsel %vm1254, %v1239, %v1241
      %v1262 = vsel %vm1254, %v1241, %v1243
      %v1263 = vsel %vm1254, %v1243, %v1245
      %v1264 = vsel %vm1254, %v1247, %v1249
      %v1265 = vsel %vm1254, %v1249, %v1251
      %v1266 = vsel %vm1254, %v1251, %v1253
      %v1280 = vsel %vm1088, %v1205, 0
      %1282 = vmatprep.subr.bf16.mxu0 %v1256
      %1283 = vmatpush1.bf16.msra.mxu0 %v1255
      %1284 = vmatprep.subr.bf16.mxu0 %v1259
      %1285 = vmatpush1.bf16.msra.mxu0 %v1258
      %1286 = vmatprep.subr.bf16.mxu0 %v1262
      %1287 = vmatpush1.bf16.msra.mxu0 %v1261
      %1288 = vmatprep.subr.bf16.mxu0 %v1265
      %1289 = vmatpush1.bf16.msra.mxu0 %v1264
      %1290 = vmatprep.subr.bf16.mxu0 0
      %1291 = vmatpush1.bf16.msra.mxu0 0
      %1292 = vmatprep.subr.bf16.mxu0 0
      %1293 = vmatpush1.bf16.msra.mxu0 0
      %1294 = vmatprep.subr.bf16.mxu0 0
      %1295 = vmatpush1.bf16.msra.mxu0 0
      %1296 = vmatprep.subr.bf16.mxu0 0
      %1297 = vmatpush1.bf16.msra.mxu0 0
      %1298 = vmatprep.subr.bf16.mxu0 0
      %1299 = vmatpush1.bf16.msra.mxu0 0
      %1300 = vmatprep.subr.bf16.mxu0 0
      %1301 = vmatpush1.bf16.msra.mxu0 0
      %1302 = vmatprep.subr.bf16.mxu0 0
      %1303 = vmatpush1.bf16.msra.mxu0 0
      %1304 = vmatprep.subr.bf16.mxu0 0
      %1305 = vmatpush1.bf16.msra.mxu0 0
      %1306 = vmatprep.subr.bf16.mxu0 0
      %1307 = vmatpush1.bf16.msra.mxu0 0
      %1308 = vmatprep.subr.bf16.mxu0 0
      %1309 = vmatpush1.bf16.msra.mxu0 0
      %1310 = vmatprep.subr.bf16.mxu0 0
      %1311 = vmatpush1.bf16.msra.mxu0 0
      %1312 = vmatprep.subr.bf16.mxu0 0
      %1313 = vmatpush1.bf16.msra.mxu0 0
      %1314 = vmatprep.mubr.bf16.mxu0 0
      %1315 = vmatmul.mubr.bf16.gmra.mrb[0].mxu0 %v1280
      %v1316 = vpop.f32.mrb[0].mxu0
      %v1317 = vadd.f32 %v318, %v1316
      %v1318 = vpop.f32.mrb[0].mxu0
      %v1319 = vadd.f32 %v318, %v1318
      %v1320 = vpop.f32.mrb[0].mxu0
      %v1321 = vpop.f32.mrb[0].mxu0
      %1322 = vdwg.mxu0
      %1323 = vmatprep.subr.bf16.mxu0 0
      %1324 = vmatpush1.bf16.msra.mxu0 %v1257
      %1325 = vmatprep.subr.bf16.mxu0 0
      %1326 = vmatpush1.bf16.msra.mxu0 %v1260
      %1327 = vmatprep.subr.bf16.mxu0 0
      %1328 = vmatpush1.bf16.msra.mxu0 %v1263
      %1329 = vmatprep.subr.bf16.mxu0 0
      %1330 = vmatpush1.bf16.msra.mxu0 %v1266
      %1331 = vmatprep.subr.bf16.mxu0 0
      %1332 = vmatpush1.bf16.msra.mxu0 0
      %1333 = vmatprep.subr.bf16.mxu0 0
      %1334 = vmatpush1.bf16.msra.mxu0 0
      %1335 = vmatprep.subr.bf16.mxu0 0
      %1336 = vmatpush1.bf16.msra.mxu0 0
      %1337 = vmatprep.subr.bf16.mxu0 0
      %1338 = vmatpush1.bf16.msra.mxu0 0
      %1339 = vmatprep.subr.bf16.mxu0 0
      %1340 = vmatpush1.bf16.msra.mxu0 0
      %1341 = vmatprep.subr.bf16.mxu0 0
      %1342 = vmatpush1.bf16.msra.mxu0 0
      %1343 = vmatprep.subr.bf16.mxu0 0
      %1344 = vmatpush1.bf16.msra.mxu0 0
      %1345 = vmatprep.subr.bf16.mxu0 0
      %1346 = vmatpush1.bf16.msra.mxu0 0
      %1347 = vmatprep.subr.bf16.mxu0 0
      %1348 = vmatpush1.bf16.msra.mxu0 0
      %1349 = vmatprep.subr.bf16.mxu0 0
      %1350 = vmatpush1.bf16.msra.mxu0 0
      %1351 = vmatprep.subr.bf16.mxu0 0
      %1352 = vmatpush1.bf16.msra.mxu0 0
      %1353 = vmatprep.subr.bf16.mxu0 0
      %1354 = vmatpush1.bf16.msra.mxu0 0
      %1355 = vmatprep.mubr.bf16.mxu0 0
      %1356 = vmatmul.mubr.bf16.gmra.mrb[0].mxu0 %v1280
      %v1357 = vpop.f32.mrb[0].mxu0
      %v1358 = vadd.f32 %v318, %v1357
      %v1359 = vpop.f32.mrb[0].mxu0
      %v1360 = vpop.f32.mrb[0].mxu0
      %v1361 = vpop.f32.mrb[0].mxu0
      %1362 = vdwg.mxu0
      %v1363 = vmax.f32 %v1317, 0.0
      %v1364 = vmax.f32 %v1319, 0.0
      %v1365 = vmax.f32 %v1358, 0.0
      %v1366 = vmin.f32 %v1363, 6.0
      %v1367 = vmin.f32 %v1364, 6.0
      %v1368 = vmin.f32 %v1365, 6.0
      %v1369 = vmul.f32 %v1366, %v520
      %v1370 = vmul.f32 %v1367, %v524
      %v1371 = vmul.f32 %v1368, %v528
      %v1372 = vpack.c.bf16 %v1369, %v1369
      %v1373 = vpack.c.bf16 %v1370, %v1370
      %v1374 = vpack.c.bf16 %v1371, %v1371
      %v1378 = vrot.slane %v1372, 6
      %v1379 = vrot.slane %v1373, 6
      %v1380 = vrot.slane %v1374, 6
      %1384 = vst [vmem:[#allocation5 + $0x8] sm:$0xc] %v1378
      %1385 = vst [vmem:[#allocation5 + $0x10] sm:$0xc] %v1379
      %1386 = vst.msk [vmem:[#allocation5 + $0x18] sm:$0xc] %vm663, %v1380
      %v1387 = vld [vmem:[#allocation4] sm:$0xff]
      %v1388 = vld [vmem:[#allocation4 + $0x8] sm:$0xff]
      %v1389 = vld [vmem:[#allocation4 + $0x10] sm:$0xff]
      %v1390 = vld [vmem:[#allocation4 + $0x18] sm:$0xff]
      %v1391 = vld [vmem:[#allocation4 + $0x20] sm:$0xff]
      %v1392 = vld [vmem:[#allocation4 + $0x28] sm:$0xff]
      %v1393 = vld [vmem:[#allocation4 + $0x30] sm:$0xff]
      %v1394 = vld [vmem:[#allocation4 + $0x38] sm:$0xff]
      %v1395 = vld [vmem:[#allocation4 + $0x40] sm:$0xff]
      %v1396 = vld [vmem:[#allocation4 + $0x48] sm:$0xff]
      %v1397 = vld [vmem:[#allocation4 + $0x50] sm:$0xff]
      %v1398 = vld [vmem:[#allocation4 + $0x58] sm:$0xff]
      %v1399 = vld [vmem:[#allocation4 + $0x60] sm:$0xff]
      %v1400 = vld [vmem:[#allocation4 + $0x68] sm:$0xff]
      %v1401 = vld [vmem:[#allocation4 + $0x70] sm:$0xff]
      %v1402 = vld [vmem:[#allocation4 + $0x78] sm:$0xff]
      %s1403 = scalar_lea.vmem %s3, 4
      %v1404 = vld [vmem:[%s1403] sm:$0x3]
      %1421 = vrot.lane.b32.xlu0 %v1387, 1
      %v1422 = vpop.permute.xlu0 %1421
      %1423 = vrot.lane.b32.xlu0 %v1388, 1
      %v1424 = vpop.permute.xlu0 %1423
      %1425 = vrot.lane.b32.xlu0 %v1389, 1
      %v1426 = vpop.permute.xlu0 %1425
      %1427 = vrot.lane.b32.xlu0 %v1390, 1
      %v1428 = vpop.permute.xlu0 %1427
      %1429 = vrot.lane.b32.xlu0 %v1391, 1
      %v1430 = vpop.permute.xlu0 %1429
      %1431 = vrot.lane.b32.xlu0 %v1392, 1
      %v1432 = vpop.permute.xlu0 %1431
      %1433 = vrot.lane.b32.xlu0 %v1393, 1
      %v1434 = vpop.permute.xlu0 %1433
      %1435 = vrot.lane.b32.xlu0 %v1394, 1
      %v1436 = vpop.permute.xlu0 %1435
      %1437 = vrot.lane.b32.xlu0 %v1395, 1
      %v1438 = vpop.permute.xlu0 %1437
      %1439 = vrot.lane.b32.xlu0 %v1396, 1
      %v1440 = vpop.permute.xlu0 %1439
      %1441 = vrot.lane.b32.xlu0 %v1397, 1
      %v1442 = vpop.permute.xlu0 %1441
      %1443 = vrot.lane.b32.xlu0 %v1398, 1
      %v1444 = vpop.permute.xlu0 %1443
      %1445 = vrot.lane.b32.xlu0 %v1399, 1
      %v1446 = vpop.permute.xlu0 %1445
      %1447 = vrot.lane.b32.xlu0 %v1400, 1
      %v1448 = vpop.permute.xlu0 %1447
      %1449 = vrot.lane.b32.xlu0 %v1401, 1
      %v1450 = vpop.permute.xlu0 %1449
      %1451 = vrot.lane.b32.xlu0 %v1402, 1
      %v1452 = vpop.permute.xlu0 %1451
      %v1453 = vsel %vm354, %v1422, %v1424
      %v1454 = vsel %vm354, %v1424, %v1426
      %v1455 = vsel %vm354, %v1426, %v1428
      %v1456 = vsel %vm354, %v1430, %v1432
      %v1457 = vsel %vm354, %v1432, %v1434
      %v1458 = vsel %vm354, %v1434, %v1436
      %v1459 = vsel %vm354, %v1438, %v1440
      %v1460 = vsel %vm354, %v1440, %v1442
      %v1461 = vsel %vm354, %v1442, %v1444
      %v1462 = vsel %vm354, %v1446, %v1448
      %v1463 = vsel %vm354, %v1448, %v1450
      %v1464 = vsel %vm354, %v1450, %v1452
      %v1478 = vsel %vm1088, %v1404, 0
      %1480 = vmatprep.subr.bf16.mxu0 %v1454
      %1481 = vmatpush1.bf16.msra.mxu0 %v1453
      %1482 = vmatprep.subr.bf16.mxu0 %v1457
      %1483 = vmatpush1.bf16.msra.mxu0 %v1456
      %1484 = vmatprep.subr.bf16.mxu0 %v1460
      %1485 = vmatpush1.bf16.msra.mxu0 %v1459
      %1486 = vmatprep.subr.bf16.mxu0 %v1463
      %1487 = vmatpush1.bf16.msra.mxu0 %v1462
      %1488 = vmatprep.subr.bf16.mxu0 0
      %1489 = vmatpush1.bf16.msra.mxu0 0
      %1490 = vmatprep.subr.bf16.mxu0 0
      %1491 = vmatpush1.bf16.msra.mxu0 0
      %1492 = vmatprep.subr.bf16.mxu0 0
      %1493 = vmatpush1.bf16.msra.mxu0 0
      %1494 = vmatprep.subr.bf16.mxu0 0
      %1495 = vmatpush1.bf16.msra.mxu0 0
      %1496 = vmatprep.subr.bf16.mxu0 0
      %1497 = vmatpush1.bf16.msra.mxu0 0
      %1498 = vmatprep.subr.bf16.mxu0 0
      %1499 = vmatpush1.bf16.msra.mxu0 0
      %1500 = vmatprep.subr.bf16.mxu0 0
      %1501 = vmatpush1.bf16.msra.mxu0 0
      %1502 = vmatprep.subr.bf16.mxu0 0
      %1503 = vmatpush1.bf16.msra.mxu0 0
      %1504 = vmatprep.subr.bf16.mxu0 0
      %1505 = vmatpush1.bf16.msra.mxu0 0
      %1506 = vmatprep.subr.bf16.mxu0 0
      %1507 = vmatpush1.bf16.msra.mxu0 0
      %1508 = vmatprep.subr.bf16.mxu0 0
      %1509 = vmatpush1.bf16.msra.mxu0 0
      %1510 = vmatprep.subr.bf16.mxu0 0
      %1511 = vmatpush1.bf16.msra.mxu0 0
      %1512 = vmatprep.mubr.bf16.mxu0 0
      %1513 = vmatmul.mubr.bf16.gmra.mrb[0].mxu0 %v1478
      %v1514 = vpop.f32.mrb[0].mxu0
      %v1515 = vadd.f32 %v318, %v1514
      %v1516 = vpop.f32.mrb[0].mxu0
      %v1517 = vadd.f32 %v318, %v1516
      %v1518 = vpop.f32.mrb[0].mxu0
      %v1519 = vpop.f32.mrb[0].mxu0
      %1520 = vdwg.mxu0
      %1521 = vmatprep.subr.bf16.mxu0 0
      %1522 = vmatpush1.bf16.msra.mxu0 %v1455
      %1523 = vmatprep.subr.bf16.mxu0 0
      %1524 = vmatpush1.bf16.msra.mxu0 %v1458
      %1525 = vmatprep.subr.bf16.mxu0 0
      %1526 = vmatpush1.bf16.msra.mxu0 %v1461
      %1527 = vmatprep.subr.bf16.mxu0 0
      %1528 = vmatpush1.bf16.msra.mxu0 %v1464
      %1529 = vmatprep.subr.bf16.mxu0 0
      %1530 = vmatpush1.bf16.msra.mxu0 0
      %1531 = vmatprep.subr.bf16.mxu0 0
      %1532 = vmatpush1.bf16.msra.mxu0 0
      %1533 = vmatprep.subr.bf16.mxu0 0
      %1534 = vmatpush1.bf16.msra.mxu0 0
      %1535 = vmatprep.subr.bf16.mxu0 0
      %1536 = vmatpush1.bf16.msra.mxu0 0
      %1537 = vmatprep.subr.bf16.mxu0 0
      %1538 = vmatpush1.bf16.msra.mxu0 0
      %1539 = vmatprep.subr.bf16.mxu0 0
      %1540 = vmatpush1.bf16.msra.mxu0 0
      %1541 = vmatprep.subr.bf16.mxu0 0
      %1542 = vmatpush1.bf16.msra.mxu0 0
      %1543 = vmatprep.subr.bf16.mxu0 0
      %1544 = vmatpush1.bf16.msra.mxu0 0
      %1545 = vmatprep.subr.bf16.mxu0 0
      %1546 = vmatpush1.bf16.msra.mxu0 0
      %1547 = vmatprep.subr.bf16.mxu0 0
      %1548 = vmatpush1.bf16.msra.mxu0 0
      %1549 = vmatprep.subr.bf16.mxu0 0
      %1550 = vmatpush1.bf16.msra.mxu0 0
      %1551 = vmatprep.subr.bf16.mxu0 0
      %1552 = vmatpush1.bf16.msra.mxu0 0
      %1553 = vmatprep.mubr.bf16.mxu0 0
      %1554 = vmatmul.mubr.bf16.gmra.mrb[0].mxu0 %v1478
      %v1555 = vpop.f32.mrb[0].mxu0
      %v1556 = vadd.f32 %v318, %v1555
      %v1557 = vpop.f32.mrb[0].mxu0
      %v1558 = vpop.f32.mrb[0].mxu0
      %v1559 = vpop.f32.mrb[0].mxu0
      %1560 = vdwg.mxu0
      %v1561 = vmax.f32 %v1515, 0.0
      %v1562 = vmax.f32 %v1517, 0.0
      %v1563 = vmax.f32 %v1556, 0.0
      %v1564 = vmin.f32 %v1561, 6.0
      %v1565 = vmin.f32 %v1562, 6.0
      %v1566 = vmin.f32 %v1563, 6.0
      %v1567 = vmul.f32 %v1564, %v520
      %v1568 = vmul.f32 %v1565, %v524
      %v1569 = vmul.f32 %v1566, %v528
      %v1570 = vpack.c.bf16 %v1567, %v1567
      %v1571 = vpack.c.bf16 %v1568, %v1568
      %v1572 = vpack.c.bf16 %v1569, %v1569
      %v1576 = vrot.slane %v1570, 4
      %v1577 = vrot.slane %v1571, 4
      %v1578 = vrot.slane %v1572, 4
      %1582 = vst [vmem:[#allocation5 + $0x8] sm:$0x30] %v1576
      %1583 = vst [vmem:[#allocation5 + $0x10] sm:$0x30] %v1577
      %1584 = vst.msk [vmem:[#allocation5 + $0x18] sm:$0x30] %vm785, %v1578
      %v1585 = vld [vmem:[#allocation4 + $0x8] sm:$0xff]
      %v1586 = vld [vmem:[#allocation4 + $0x10] sm:$0xff]
      %v1587 = vld [vmem:[#allocation4 + $0x18] sm:$0xff]
      %v1588 = vld [vmem:[#allocation4 + $0x28] sm:$0xff]
      %v1589 = vld [vmem:[#allocation4 + $0x30] sm:$0xff]
      %v1590 = vld [vmem:[#allocation4 + $0x38] sm:$0xff]
      %v1591 = vld [vmem:[#allocation4 + $0x48] sm:$0xff]
      %v1592 = vld [vmem:[#allocation4 + $0x50] sm:$0xff]
      %v1593 = vld [vmem:[#allocation4 + $0x58] sm:$0xff]
      %v1594 = vld [vmem:[#allocation4 + $0x68] sm:$0xff]
      %v1595 = vld [vmem:[#allocation4 + $0x70] sm:$0xff]
      %v1596 = vld [vmem:[#allocation4 + $0x78] sm:$0xff]
      %s1597 = scalar_lea.vmem %s3, 6
      %v1598 = vld [vmem:[%s1597] sm:$0x3]
      %v1600 = vsel %vm1088, %v1598, 0
      %1602 = vmatprep.subr.bf16.mxu0 %v1586
      %1603 = vmatpush1.bf16.msra.mxu0 %v1585
      %1604 = vmatprep.subr.bf16.mxu0 %v1589
      %1605 = vmatpush1.bf16.msra.mxu0 %v1588
      %1606 = vmatprep.subr.bf16.mxu0 %v1592
      %1607 = vmatpush1.bf16.msra.mxu0 %v1591
      %1608 = vmatprep.subr.bf16.mxu0 %v1595
      %1609 = vmatpush1.bf16.msra.mxu0 %v1594
      %1610 = vmatprep.subr.bf16.mxu0 0
      %1611 = vmatpush1.bf16.msra.mxu0 0
      %1612 = vmatprep.subr.bf16.mxu0 0
      %1613 = vmatpush1.bf16.msra.mxu0 0
      %1614 = vmatprep.subr.bf16.mxu0 0
      %1615 = vmatpush1.bf16.msra.mxu0 0
      %1616 = vmatprep.subr.bf16.mxu0 0
      %1617 = vmatpush1.bf16.msra.mxu0 0
      %1618 = vmatprep.subr.bf16.mxu0 0
      %1619 = vmatpush1.bf16.msra.mxu0 0
      %1620 = vmatprep.subr.bf16.mxu0 0
      %1621 = vmatpush1.bf16.msra.mxu0 0
      %1622 = vmatprep.subr.bf16.mxu0 0
      %1623 = vmatpush1.bf16.msra.mxu0 0
      %1624 = vmatprep.subr.bf16.mxu0 0
      %1625 = vmatpush1.bf16.msra.mxu0 0
      %1626 = vmatprep.subr.bf16.mxu0 0
      %1627 = vmatpush1.bf16.msra.mxu0 0
      %1628 = vmatprep.subr.bf16.mxu0 0
      %1629 = vmatpush1.bf16.msra.mxu0 0
      %1630 = vmatprep.subr.bf16.mxu0 0
      %1631 = vmatpush1.bf16.msra.mxu0 0
      %1632 = vmatprep.subr.bf16.mxu0 0
      %1633 = vmatpush1.bf16.msra.mxu0 0
      %1634 = vmatprep.mubr.bf16.mxu0 0
      %1635 = vmatmul.mubr.bf16.gmra.mrb[0].mxu0 %v1600
      %v1636 = vpop.f32.mrb[0].mxu0
      %v1637 = vadd.f32 %v318, %v1636
      %v1638 = vpop.f32.mrb[0].mxu0
      %v1639 = vadd.f32 %v318, %v1638
      %v1640 = vpop.f32.mrb[0].mxu0
      %v1641 = vpop.f32.mrb[0].mxu0
      %1642 = vdwg.mxu0
      %1643 = vmatprep.subr.bf16.mxu0 0
      %1644 = vmatpush1.bf16.msra.mxu0 %v1587
      %1645 = vmatprep.subr.bf16.mxu0 0
      %1646 = vmatpush1.bf16.msra.mxu0 %v1590
      %1647 = vmatprep.subr.bf16.mxu0 0
      %1648 = vmatpush1.bf16.msra.mxu0 %v1593
      %1649 = vmatprep.subr.bf16.mxu0 0
      %1650 = vmatpush1.bf16.msra.mxu0 %v1596
      %1651 = vmatprep.subr.bf16.mxu0 0
      %1652 = vmatpush1.bf16.msra.mxu0 0
      %1653 = vmatprep.subr.bf16.mxu0 0
      %1654 = vmatpush1.bf16.msra.mxu0 0
      %1655 = vmatprep.subr.bf16.mxu0 0
      %1656 = vmatpush1.bf16.msra.mxu0 0
      %1657 = vmatprep.subr.bf16.mxu0 0
      %1658 = vmatpush1.bf16.msra.mxu0 0
      %1659 = vmatprep.subr.bf16.mxu0 0
      %1660 = vmatpush1.bf16.msra.mxu0 0
      %1661 = vmatprep.subr.bf16.mxu0 0
      %1662 = vmatpush1.bf16.msra.mxu0 0
      %1663 = vmatprep.subr.bf16.mxu0 0
      %1664 = vmatpush1.bf16.msra.mxu0 0
      %1665 = vmatprep.subr.bf16.mxu0 0
      %1666 = vmatpush1.bf16.msra.mxu0 0
      %1667 = vmatprep.subr.bf16.mxu0 0
      %1668 = vmatpush1.bf16.msra.mxu0 0
      %1669 = vmatprep.subr.bf16.mxu0 0
      %1670 = vmatpush1.bf16.msra.mxu0 0
      %1671 = vmatprep.subr.bf16.mxu0 0
      %1672 = vmatpush1.bf16.msra.mxu0 0
      %1673 = vmatprep.subr.bf16.mxu0 0
      %1674 = vmatpush1.bf16.msra.mxu0 0
      %1675 = vmatprep.mubr.bf16.mxu0 0
      %1676 = vmatmul.mubr.bf16.gmra.mrb[0].mxu0 %v1600
      %v1677 = vpop.f32.mrb[0].mxu0
      %v1678 = vadd.f32 %v318, %v1677
      %v1679 = vpop.f32.mrb[0].mxu0
      %v1680 = vpop.f32.mrb[0].mxu0
      %v1681 = vpop.f32.mrb[0].mxu0
      %1682 = vdwg.mxu0
      %v1683 = vmax.f32 %v1637, 0.0
      %v1684 = vmax.f32 %v1639, 0.0
      %v1685 = vmax.f32 %v1678, 0.0
      %v1686 = vmin.f32 %v1683, 6.0
      %v1687 = vmin.f32 %v1684, 6.0
      %v1688 = vmin.f32 %v1685, 6.0
      %v1689 = vmul.f32 %v1686, %v520
      %v1690 = vmul.f32 %v1687, %v524
      %v1691 = vmul.f32 %v1688, %v528
      %v1692 = vpack.c.bf16 %v1689, %v1689
      %v1693 = vpack.c.bf16 %v1690, %v1690
      %v1694 = vpack.c.bf16 %v1691, %v1691
      %v1698 = vrot.slane %v1692, 2
      %v1699 = vrot.slane %v1693, 2
      %v1700 = vrot.slane %v1694, 2
      %1704 = vst [vmem:[#allocation5 + $0x8] sm:$0xc0] %v1698
      %1705 = vst [vmem:[#allocation5 + $0x10] sm:$0xc0] %v1699
      %1706 = vst.msk [vmem:[#allocation5 + $0x18] sm:$0xc0] %vm908, %v1700
      %v1707 = vld [vmem:[#allocation5] sm:$0xff]
      %v1708 = vld [vmem:[#allocation5 + $0x8] sm:$0xff]
      %v1709 = vld [vmem:[#allocation5 + $0x10] sm:$0xff]
      %v1710 = vld [vmem:[#allocation5 + $0x18] sm:$0xff]
      %1711 = vst.msk [vmem:[#allocation6] sm:$0xff] %vm914, %v1707
      %1712 = vst [vmem:[#allocation6 + $0x8] sm:$0xff] %v1708
      %1713 = vst [vmem:[#allocation6 + $0x10] sm:$0xff] %v1709
      %1714 = vst.msk [vmem:[#allocation6 + $0x18] sm:$0xff] %vm425, %v1710
      %v1715 = vld [vmem:[#allocation5] sm:$0xff]
      %v1716 = vld [vmem:[#allocation5 + $0x8] sm:$0xff]
      %v1717 = vld [vmem:[#allocation5 + $0x10] sm:$0xff]
      %v1718 = vld [vmem:[#allocation5 + $0x18] sm:$0xff]
      %1723 = vrot.lane.b32.xlu0 %v1715, 127
      %v1724 = vpop.permute.xlu0 %1723
      %1725 = vrot.lane.b32.xlu0 %v1716, 127
      %v1726 = vpop.permute.xlu0 %1725
      %1727 = vrot.lane.b32.xlu0 %v1717, 127
      %v1728 = vpop.permute.xlu0 %1727
      %1729 = vrot.lane.b32.xlu0 %v1718, 127
      %v1730 = vpop.permute.xlu0 %1729
      %v1731 = vsel %vm556, %v1724, %v1726
      %v1732 = vsel %vm556, %v1726, %v1728
      %v1733 = vsel %vm556, %v1728, %v1730
      %1738 = vst.msk [vmem:[#allocation6 + $0x20] sm:$0xff] %vm914, %v1731
      %1739 = vst [vmem:[#allocation6 + $0x28] sm:$0xff] %v1732
      %1740 = vst [vmem:[#allocation6 + $0x30] sm:$0xff] %v1733
      %1741 = vst.msk [vmem:[#allocation6 + $0x38] sm:$0xff] %vm425, %v1730
      %v1742 = vld [vmem:[#allocation5] sm:$0xff]
      %v1743 = vld [vmem:[#allocation5 + $0x8] sm:$0xff]
      %v1744 = vld [vmem:[#allocation5 + $0x10] sm:$0xff]
      %v1745 = vld [vmem:[#allocation5 + $0x18] sm:$0xff]
      %1750 = vrot.lane.b32.xlu0 %v1742, 110
      %v1751 = vpop.permute.xlu0 %1750
      %1752 = vrot.lane.b32.xlu0 %v1743, 110
      %v1753 = vpop.permute.xlu0 %1752
      %1754 = vrot.lane.b32.xlu0 %v1744, 110
      %v1755 = vpop.permute.xlu0 %1754
      %1756 = vrot.lane.b32.xlu0 %v1745, 110
      %v1757 = vpop.permute.xlu0 %1756
      %v1758 = vsel %vm409, %v1751, %v1753
      %v1759 = vsel %vm409, %v1753, %v1755
      %v1760 = vsel %vm409, %v1755, %v1757
      %1765 = vst.msk [vmem:[#allocation6 + $0x40] sm:$0xff] %vm914, %v1758
      %1766 = vst [vmem:[#allocation6 + $0x48] sm:$0xff] %v1759
      %1767 = vst [vmem:[#allocation6 + $0x50] sm:$0xff] %v1760
      %1768 = vst.msk [vmem:[#allocation6 + $0x58] sm:$0xff] %vm425, %v1757
      %v1769 = vld [vmem:[#allocation5 + $0x8] sm:$0xff]
      %v1770 = vld [vmem:[#allocation5 + $0x10] sm:$0xff]
      %v1771 = vld [vmem:[#allocation5 + $0x18] sm:$0xff]
      %1775 = vrot.lane.b32.xlu0 %v1769, 109
      %v1776 = vpop.permute.xlu0 %1775
      %1777 = vrot.lane.b32.xlu0 %v1770, 109
      %v1778 = vpop.permute.xlu0 %1777
      %1779 = vrot.lane.b32.xlu0 %v1771, 109
      %v1780 = vpop.permute.xlu0 %1779
      %v1781 = vsel %vm801, %v1776, %v1778
      %v1782 = vsel %vm801, %v1778, %v1780
      %1787 = vst.msk [vmem:[#allocation6 + $0x60] sm:$0xff] %vm914, %v1776
      %1788 = vst [vmem:[#allocation6 + $0x68] sm:$0xff] %v1781
      %1789 = vst [vmem:[#allocation6 + $0x70] sm:$0xff] %v1782
      %1790 = vst.msk [vmem:[#allocation6 + $0x78] sm:$0xff] %vm425, %v1780
      %v1791 = vld [vmem:[#allocation6] sm:$0xff]
      %v1792 = vld [vmem:[#allocation6 + $0x8] sm:$0xff]
      %v1793 = vld [vmem:[#allocation6 + $0x10] sm:$0xff]
      %v1794 = vld [vmem:[#allocation6 + $0x18] sm:$0xff]
      %v1795 = vld [vmem:[#allocation6 + $0x20] sm:$0xff]
      %v1796 = vld [vmem:[#allocation6 + $0x28] sm:$0xff]
      %v1797 = vld [vmem:[#allocation6 + $0x30] sm:$0xff]
      %v1798 = vld [vmem:[#allocation6 + $0x38] sm:$0xff]
      %v1799 = vld [vmem:[#allocation6 + $0x40] sm:$0xff]
      %v1800 = vld [vmem:[#allocation6 + $0x48] sm:$0xff]
      %v1801 = vld [vmem:[#allocation6 + $0x50] sm:$0xff]
      %v1802 = vld [vmem:[#allocation6 + $0x58] sm:$0xff]
      %v1803 = vld [vmem:[#allocation6 + $0x60] sm:$0xff]
      %v1804 = vld [vmem:[#allocation6 + $0x68] sm:$0xff]
      %v1805 = vld [vmem:[#allocation6 + $0x70] sm:$0xff]
      %v1806 = vld [vmem:[#allocation6 + $0x78] sm:$0xff]
      %v1807 = vld [vmem:[%s5] sm:$0xf]
      %1824 = vrot.lane.b32.xlu0 %v1791, 19
      %v1825 = vpop.permute.xlu0 %1824
      %1826 = vrot.lane.b32.xlu0 %v1792, 19
      %v1827 = vpop.permute.xlu0 %1826
      %1828 = vrot.lane.b32.xlu0 %v1793, 19
      %v1829 = vpop.permute.xlu0 %1828
      %1830 = vrot.lane.b32.xlu0 %v1794, 19
      %v1831 = vpop.permute.xlu0 %1830
      %1832 = vrot.lane.b32.xlu0 %v1795, 19
      %v1833 = vpop.permute.xlu0 %1832
      %1834 = vrot.lane.b32.xlu0 %v1796, 19
      %v1835 = vpop.permute.xlu0 %1834
      %1836 = vrot.lane.b32.xlu0 %v1797, 19
      %v1837 = vpop.permute.xlu0 %1836
      %1838 = vrot.lane.b32.xlu0 %v1798, 19
      %v1839 = vpop.permute.xlu0 %1838
      %1840 = vrot.lane.b32.xlu0 %v1799, 19
      %v1841 = vpop.permute.xlu0 %1840
      %1842 = vrot.lane.b32.xlu0 %v1800, 19
      %v1843 = vpop.permute.xlu0 %1842
      %1844 = vrot.lane.b32.xlu0 %v1801, 19
      %v1845 = vpop.permute.xlu0 %1844
      %1846 = vrot.lane.b32.xlu0 %v1802, 19
      %v1847 = vpop.permute.xlu0 %1846
      %1848 = vrot.lane.b32.xlu0 %v1803, 19
      %v1849 = vpop.permute.xlu0 %1848
      %1850 = vrot.lane.b32.xlu0 %v1804, 19
      %v1851 = vpop.permute.xlu0 %1850
      %1852 = vrot.lane.b32.xlu0 %v1805, 19
      %v1853 = vpop.permute.xlu0 %1852
      %1854 = vrot.lane.b32.xlu0 %v1806, 19
      %v1855 = vpop.permute.xlu0 %1854
      %v1856 = vsel %vm1063, %v1825, %v1827
      %v1857 = vsel %vm1063, %v1827, %v1829
      %v1858 = vsel %vm1063, %v1829, %v1831
      %v1859 = vsel %vm1063, %v1833, %v1835
      %v1860 = vsel %vm1063, %v1835, %v1837
      %v1861 = vsel %vm1063, %v1837, %v1839
      %v1862 = vsel %vm1063, %v1841, %v1843
      %v1863 = vsel %vm1063, %v1843, %v1845
      %v1864 = vsel %vm1063, %v1845, %v1847
      %v1865 = vsel %vm1063, %v1849, %v1851
      %v1866 = vsel %vm1063, %v1851, %v1853
      %v1867 = vsel %vm1063, %v1853, %v1855
      %v1881 = vsel %vm1088, %v1807, 0
      %1883 = vmatprep.subr.bf16.mxu0 %v1857
      %1884 = vmatpush1.bf16.msra.mxu0 %v1856
      %1885 = vmatprep.subr.bf16.mxu0 %v1860
      %1886 = vmatpush1.bf16.msra.mxu0 %v1859
      %1887 = vmatprep.subr.bf16.mxu0 %v1863
      %1888 = vmatpush1.bf16.msra.mxu0 %v1862
      %1889 = vmatprep.subr.bf16.mxu0 %v1866
      %1890 = vmatpush1.bf16.msra.mxu0 %v1865
      %1891 = vmatprep.subr.bf16.mxu0 0
      %1892 = vmatpush1.bf16.msra.mxu0 0
      %1893 = vmatprep.subr.bf16.mxu0 0
      %1894 = vmatpush1.bf16.msra.mxu0 0
      %1895 = vmatprep.subr.bf16.mxu0 0
      %1896 = vmatpush1.bf16.msra.mxu0 0
      %1897 = vmatprep.subr.bf16.mxu0 0
      %1898 = vmatpush1.bf16.msra.mxu0 0
      %1899 = vmatprep.subr.bf16.mxu0 0
      %1900 = vmatpush1.bf16.msra.mxu0 0
      %1901 = vmatprep.subr.bf16.mxu0 0
      %1902 = vmatpush1.bf16.msra.mxu0 0
      %1903 = vmatprep.subr.bf16.mxu0 0
      %1904 = vmatpush1.bf16.msra.mxu0 0
      %1905 = vmatprep.subr.bf16.mxu0 0
      %1906 = vmatpush1.bf16.msra.mxu0 0
      %1907 = vmatprep.subr.bf16.mxu0 0
      %1908 = vmatpush1.bf16.msra.mxu0 0
      %1909 = vmatprep.subr.bf16.mxu0 0
      %1910 = vmatpush1.bf16.msra.mxu0 0
      %1911 = vmatprep.subr.bf16.mxu0 0
      %1912 = vmatpush1.bf16.msra.mxu0 0
      %1913 = vmatprep.subr.bf16.mxu0 0
      %1914 = vmatpush1.bf16.msra.mxu0 0
      %1915 = vmatprep.mubr.bf16.mxu0 0
      %1916 = vmatmul.mubr.bf16.gmra.mrb[0].mxu0 %v1881
      %v1917 = vpop.f32.mrb[0].mxu0
      %v1918 = vadd.f32 %v324, %v1917
      %v1919 = vpop.f32.mrb[0].mxu0
      %v1920 = vadd.f32 %v324, %v1919
      %v1921 = vpop.f32.mrb[0].mxu0
      %v1922 = vpop.f32.mrb[0].mxu0
      %1923 = vdwg.mxu0
      %1924 = vmatprep.subr.bf16.mxu0 0
      %1925 = vmatpush1.bf16.msra.mxu0 %v1858
      %1926 = vmatprep.subr.bf16.mxu0 0
      %1927 = vmatpush1.bf16.msra.mxu0 %v1861
      %1928 = vmatprep.subr.bf16.mxu0 0
      %1929 = vmatpush1.bf16.msra.mxu0 %v1864
      %1930 = vmatprep.subr.bf16.mxu0 0
      %1931 = vmatpush1.bf16.msra.mxu0 %v1867
      %1932 = vmatprep.subr.bf16.mxu0 0
      %1933 = vmatpush1.bf16.msra.mxu0 0
      %1934 = vmatprep.subr.bf16.mxu0 0
      %1935 = vmatpush1.bf16.msra.mxu0 0
      %1936 = vmatprep.subr.bf16.mxu0 0
      %1937 = vmatpush1.bf16.msra.mxu0 0
      %1938 = vmatprep.subr.bf16.mxu0 0
      %1939 = vmatpush1.bf16.msra.mxu0 0
      %1940 = vmatprep.subr.bf16.mxu0 0
      %1941 = vmatpush1.bf16.msra.mxu0 0
      %1942 = vmatprep.subr.bf16.mxu0 0
      %1943 = vmatpush1.bf16.msra.mxu0 0
      %1944 = vmatprep.subr.bf16.mxu0 0
      %1945 = vmatpush1.bf16.msra.mxu0 0
      %1946 = vmatprep.subr.bf16.mxu0 0
      %1947 = vmatpush1.bf16.msra.mxu0 0
      %1948 = vmatprep.subr.bf16.mxu0 0
      %1949 = vmatpush1.bf16.msra.mxu0 0
      %1950 = vmatprep.subr.bf16.mxu0 0
      %1951 = vmatpush1.bf16.msra.mxu0 0
      %1952 = vmatprep.subr.bf16.mxu0 0
      %1953 = vmatpush1.bf16.msra.mxu0 0
      %1954 = vmatprep.subr.bf16.mxu0 0
      %1955 = vmatpush1.bf16.msra.mxu0 0
      %1956 = vmatprep.mubr.bf16.mxu0 0
      %1957 = vmatmul.mubr.bf16.gmra.mrb[0].mxu0 %v1881
      %v1958 = vpop.f32.mrb[0].mxu0
      %v1959 = vadd.f32 %v324, %v1958
      %v1960 = vpop.f32.mrb[0].mxu0
      %v1961 = vpop.f32.mrb[0].mxu0
      %v1962 = vpop.f32.mrb[0].mxu0
      %1963 = vdwg.mxu0
      %v1964 = vmul.f32 %v1918, %v520
      %v1965 = vmul.f32 %v1920, %v524
      %v1966 = vmul.f32 %v1959, %v528
      %v1967 = vpack.c.bf16 %v1964, %v1964
      %v1968 = vpack.c.bf16 %v1965, %v1965
      %v1969 = vpack.c.bf16 %v1966, %v1966
      %v1973 = vunpack.c.l.b16 %v1967
      %v1974 = vunpack.c.l.b16 %v1968
      %v1975 = vunpack.c.l.b16 %v1969
      %v1976 = vpack.c.b16 %v1974, %v1973
      %v1977 = vpack.c.b16 %v1975, %v1975
      %1980 = vst [vmem:[%s305] sm:$0xff] %v1976
      %vm1981 = vcmask 257024
      %1982 = vst.msk [vmem:[%s305 + $0x8] sm:$0xf] %vm1981, %v1977
      %v1983 = vld [vmem:[#allocation6] sm:$0xff]
      %v1984 = vld [vmem:[#allocation6 + $0x8] sm:$0xff]
      %v1985 = vld [vmem:[#allocation6 + $0x10] sm:$0xff]
      %v1986 = vld [vmem:[#allocation6 + $0x18] sm:$0xff]
      %v1987 = vld [vmem:[#allocation6 + $0x20] sm:$0xff]
      %v1988 = vld [vmem:[#allocation6 + $0x28] sm:$0xff]
      %v1989 = vld [vmem:[#allocation6 + $0x30] sm:$0xff]
      %v1990 = vld [vmem:[#allocation6 + $0x38] sm:$0xff]
      %v1991 = vld [vmem:[#allocation6 + $0x40] sm:$0xff]
      %v1992 = vld [vmem:[#allocation6 + $0x48] sm:$0xff]
      %v1993 = vld [vmem:[#allocation6 + $0x50] sm:$0xff]
      %v1994 = vld [vmem:[#allocation6 + $0x58] sm:$0xff]
      %v1995 = vld [vmem:[#allocation6 + $0x60] sm:$0xff]
      %v1996 = vld [vmem:[#allocation6 + $0x68] sm:$0xff]
      %v1997 = vld [vmem:[#allocation6 + $0x70] sm:$0xff]
      %v1998 = vld [vmem:[#allocation6 + $0x78] sm:$0xff]
      %s1999 = scalar_lea.vmem %s5, 4
      %v2000 = vld [vmem:[%s1999] sm:$0xf]
      %2017 = vrot.lane.b32.xlu0 %v1983, 18
      %v2018 = vpop.permute.xlu0 %2017
      %2019 = vrot.lane.b32.xlu0 %v1984, 18
      %v2020 = vpop.permute.xlu0 %2019
      %2021 = vrot.lane.b32.xlu0 %v1985, 18
      %v2022 = vpop.permute.xlu0 %2021
      %2023 = vrot.lane.b32.xlu0 %v1986, 18
      %v2024 = vpop.permute.xlu0 %2023
      %2025 = vrot.lane.b32.xlu0 %v1987, 18
      %v2026 = vpop.permute.xlu0 %2025
      %2027 = vrot.lane.b32.xlu0 %v1988, 18
      %v2028 = vpop.permute.xlu0 %2027
      %2029 = vrot.lane.b32.xlu0 %v1989, 18
      %v2030 = vpop.permute.xlu0 %2029
      %2031 = vrot.lane.b32.xlu0 %v1990, 18
      %v2032 = vpop.permute.xlu0 %2031
      %2033 = vrot.lane.b32.xlu0 %v1991, 18
      %v2034 = vpop.permute.xlu0 %2033
      %2035 = vrot.lane.b32.xlu0 %v1992, 18
      %v2036 = vpop.permute.xlu0 %2035
      %2037 = vrot.lane.b32.xlu0 %v1993, 18
      %v2038 = vpop.permute.xlu0 %2037
      %2039 = vrot.lane.b32.xlu0 %v1994, 18
      %v2040 = vpop.permute.xlu0 %2039
      %2041 = vrot.lane.b32.xlu0 %v1995, 18
      %v2042 = vpop.permute.xlu0 %2041
      %2043 = vrot.lane.b32.xlu0 %v1996, 18
      %v2044 = vpop.permute.xlu0 %2043
      %2045 = vrot.lane.b32.xlu0 %v1997, 18
      %v2046 = vpop.permute.xlu0 %2045
      %2047 = vrot.lane.b32.xlu0 %v1998, 18
      %v2048 = vpop.permute.xlu0 %2047
      %v2049 = vsel %vm1254, %v2018, %v2020
      %v2050 = vsel %vm1254, %v2020, %v2022
      %v2051 = vsel %vm1254, %v2022, %v2024
      %v2052 = vsel %vm1254, %v2026, %v2028
      %v2053 = vsel %vm1254, %v2028, %v2030
      %v2054 = vsel %vm1254, %v2030, %v2032
      %v2055 = vsel %vm1254, %v2034, %v2036
      %v2056 = vsel %vm1254, %v2036, %v2038
      %v2057 = vsel %vm1254, %v2038, %v2040
      %v2058 = vsel %vm1254, %v2042, %v2044
      %v2059 = vsel %vm1254, %v2044, %v2046
      %v2060 = vsel %vm1254, %v2046, %v2048
      %v2074 = vsel %vm1088, %v2000, 0
      %2076 = vmatprep.subr.bf16.mxu0 %v2050
      %2077 = vmatpush1.bf16.msra.mxu0 %v2049
      %2078 = vmatprep.subr.bf16.mxu0 %v2053
      %2079 = vmatpush1.bf16.msra.mxu0 %v2052
      %2080 = vmatprep.subr.bf16.mxu0 %v2056
      %2081 = vmatpush1.bf16.msra.mxu0 %v2055
      %2082 = vmatprep.subr.bf16.mxu0 %v2059
      %2083 = vmatpush1.bf16.msra.mxu0 %v2058
      %2084 = vmatprep.subr.bf16.mxu0 0
      %2085 = vmatpush1.bf16.msra.mxu0 0
      %2086 = vmatprep.subr.bf16.mxu0 0
      %2087 = vmatpush1.bf16.msra.mxu0 0
      %2088 = vmatprep.subr.bf16.mxu0 0
      %2089 = vmatpush1.bf16.msra.mxu0 0
      %2090 = vmatprep.subr.bf16.mxu0 0
      %2091 = vmatpush1.bf16.msra.mxu0 0
      %2092 = vmatprep.subr.bf16.mxu0 0
      %2093 = vmatpush1.bf16.msra.mxu0 0
      %2094 = vmatprep.subr.bf16.mxu0 0
      %2095 = vmatpush1.bf16.msra.mxu0 0
      %2096 = vmatprep.subr.bf16.mxu0 0
      %2097 = vmatpush1.bf16.msra.mxu0 0
      %2098 = vmatprep.subr.bf16.mxu0 0
      %2099 = vmatpush1.bf16.msra.mxu0 0
      %2100 = vmatprep.subr.bf16.mxu0 0
      %2101 = vmatpush1.bf16.msra.mxu0 0
      %2102 = vmatprep.subr.bf16.mxu0 0
      %2103 = vmatpush1.bf16.msra.mxu0 0
      %2104 = vmatprep.subr.bf16.mxu0 0
      %2105 = vmatpush1.bf16.msra.mxu0 0
      %2106 = vmatprep.subr.bf16.mxu0 0
      %2107 = vmatpush1.bf16.msra.mxu0 0
      %2108 = vmatprep.mubr.bf16.mxu0 0
      %2109 = vmatmul.mubr.bf16.gmra.mrb[0].mxu0 %v2074
      %v2110 = vpop.f32.mrb[0].mxu0
      %v2111 = vadd.f32 %v324, %v2110
      %v2112 = vpop.f32.mrb[0].mxu0
      %v2113 = vadd.f32 %v324, %v2112
      %v2114 = vpop.f32.mrb[0].mxu0
      %v2115 = vpop.f32.mrb[0].mxu0
      %2116 = vdwg.mxu0
      %2117 = vmatprep.subr.bf16.mxu0 0
      %2118 = vmatpush1.bf16.msra.mxu0 %v2051
      %2119 = vmatprep.subr.bf16.mxu0 0
      %2120 = vmatpush1.bf16.msra.mxu0 %v2054
      %2121 = vmatprep.subr.bf16.mxu0 0
      %2122 = vmatpush1.bf16.msra.mxu0 %v2057
      %2123 = vmatprep.subr.bf16.mxu0 0
      %2124 = vmatpush1.bf16.msra.mxu0 %v2060
      %2125 = vmatprep.subr.bf16.mxu0 0
      %2126 = vmatpush1.bf16.msra.mxu0 0
      %2127 = vmatprep.subr.bf16.mxu0 0
      %2128 = vmatpush1.bf16.msra.mxu0 0
      %2129 = vmatprep.subr.bf16.mxu0 0
      %2130 = vmatpush1.bf16.msra.mxu0 0
      %2131 = vmatprep.subr.bf16.mxu0 0
      %2132 = vmatpush1.bf16.msra.mxu0 0
      %2133 = vmatprep.subr.bf16.mxu0 0
      %2134 = vmatpush1.bf16.msra.mxu0 0
      %2135 = vmatprep.subr.bf16.mxu0 0
      %2136 = vmatpush1.bf16.msra.mxu0 0
      %2137 = vmatprep.subr.bf16.mxu0 0
      %2138 = vmatpush1.bf16.msra.mxu0 0
      %2139 = vmatprep.subr.bf16.mxu0 0
      %2140 = vmatpush1.bf16.msra.mxu0 0
      %2141 = vmatprep.subr.bf16.mxu0 0
      %2142 = vmatpush1.bf16.msra.mxu0 0
      %2143 = vmatprep.subr.bf16.mxu0 0
      %2144 = vmatpush1.bf16.msra.mxu0 0
      %2145 = vmatprep.subr.bf16.mxu0 0
      %2146 = vmatpush1.bf16.msra.mxu0 0
      %2147 = vmatprep.subr.bf16.mxu0 0
      %2148 = vmatpush1.bf16.msra.mxu0 0
      %2149 = vmatprep.mubr.bf16.mxu0 0
      %2150 = vmatmul.mubr.bf16.gmra.mrb[0].mxu0 %v2074
      %v2151 = vpop.f32.mrb[0].mxu0
      %v2152 = vadd.f32 %v324, %v2151
      %v2153 = vpop.f32.mrb[0].mxu0
      %v2154 = vpop.f32.mrb[0].mxu0
      %v2155 = vpop.f32.mrb[0].mxu0
      %2156 = vdwg.mxu0
      %v2157 = vmul.f32 %v2111, %v520
      %v2158 = vmul.f32 %v2113, %v524
      %v2159 = vmul.f32 %v2152, %v528
      %v2160 = vpack.c.bf16 %v2157, %v2157
      %v2161 = vpack.c.bf16 %v2158, %v2158
      %v2162 = vpack.c.bf16 %v2159, %v2159
      %v2166 = vunpack.c.l.b16 %v2160
      %v2167 = vunpack.c.l.b16 %v2161
      %v2168 = vunpack.c.l.b16 %v2162
      %v2169 = vpack.c.b16 %v2167, %v2166
      %v2170 = vpack.c.b16 %v2168, %v2168
      %s2173 = scalar_lea.vmem %s305, 12
      %2174 = vst [vmem:[%s2173] sm:$0xff] %v2169
      %2175 = vst.msk [vmem:[%s2173 + $0x8] sm:$0xf] %vm1981, %v2170
      %v2176 = vld [vmem:[#allocation6] sm:$0xff]
      %v2177 = vld [vmem:[#allocation6 + $0x8] sm:$0xff]
      %v2178 = vld [vmem:[#allocation6 + $0x10] sm:$0xff]
      %v2179 = vld [vmem:[#allocation6 + $0x18] sm:$0xff]
      %v2180 = vld [vmem:[#allocation6 + $0x20] sm:$0xff]
      %v2181 = vld [vmem:[#allocation6 + $0x28] sm:$0xff]
      %v2182 = vld [vmem:[#allocation6 + $0x30] sm:$0xff]
      %v2183 = vld [vmem:[#allocation6 + $0x38] sm:$0xff]
      %v2184 = vld [vmem:[#allocation6 + $0x40] sm:$0xff]
      %v2185 = vld [vmem:[#allocation6 + $0x48] sm:$0xff]
      %v2186 = vld [vmem:[#allocation6 + $0x50] sm:$0xff]
      %v2187 = vld [vmem:[#allocation6 + $0x58] sm:$0xff]
      %v2188 = vld [vmem:[#allocation6 + $0x60] sm:$0xff]
      %v2189 = vld [vmem:[#allocation6 + $0x68] sm:$0xff]
      %v2190 = vld [vmem:[#allocation6 + $0x70] sm:$0xff]
      %v2191 = vld [vmem:[#allocation6 + $0x78] sm:$0xff]
      %s2192 = scalar_lea.vmem %s5, 8
      %v2193 = vld [vmem:[%s2192] sm:$0xf]
      %2210 = vrot.lane.b32.xlu0 %v2176, 1
      %v2211 = vpop.permute.xlu0 %2210
      %2212 = vrot.lane.b32.xlu0 %v2177, 1
      %v2213 = vpop.permute.xlu0 %2212
      %2214 = vrot.lane.b32.xlu0 %v2178, 1
      %v2215 = vpop.permute.xlu0 %2214
      %2216 = vrot.lane.b32.xlu0 %v2179, 1
      %v2217 = vpop.permute.xlu0 %2216
      %2218 = vrot.lane.b32.xlu0 %v2180, 1
      %v2219 = vpop.permute.xlu0 %2218
      %2220 = vrot.lane.b32.xlu0 %v2181, 1
      %v2221 = vpop.permute.xlu0 %2220
      %2222 = vrot.lane.b32.xlu0 %v2182, 1
      %v2223 = vpop.permute.xlu0 %2222
      %2224 = vrot.lane.b32.xlu0 %v2183, 1
      %v2225 = vpop.permute.xlu0 %2224
      %2226 = vrot.lane.b32.xlu0 %v2184, 1
      %v2227 = vpop.permute.xlu0 %2226
      %2228 = vrot.lane.b32.xlu0 %v2185, 1
      %v2229 = vpop.permute.xlu0 %2228
      %2230 = vrot.lane.b32.xlu0 %v2186, 1
      %v2231 = vpop.permute.xlu0 %2230
      %2232 = vrot.lane.b32.xlu0 %v2187, 1
      %v2233 = vpop.permute.xlu0 %2232
      %2234 = vrot.lane.b32.xlu0 %v2188, 1
      %v2235 = vpop.permute.xlu0 %2234
      %2236 = vrot.lane.b32.xlu0 %v2189, 1
      %v2237 = vpop.permute.xlu0 %2236
      %2238 = vrot.lane.b32.xlu0 %v2190, 1
      %v2239 = vpop.permute.xlu0 %2238
      %2240 = vrot.lane.b32.xlu0 %v2191, 1
      %v2241 = vpop.permute.xlu0 %2240
      %v2242 = vsel %vm354, %v2211, %v2213
      %v2243 = vsel %vm354, %v2213, %v2215
      %v2244 = vsel %vm354, %v2215, %v2217
      %v2245 = vsel %vm354, %v2219, %v2221
      %v2246 = vsel %vm354, %v2221, %v2223
      %v2247 = vsel %vm354, %v2223, %v2225
      %v2248 = vsel %vm354, %v2227, %v2229
      %v2249 = vsel %vm354, %v2229, %v2231
      %v2250 = vsel %vm354, %v2231, %v2233
      %v2251 = vsel %vm354, %v2235, %v2237
      %v2252 = vsel %vm354, %v2237, %v2239
      %v2253 = vsel %vm354, %v2239, %v2241
      %v2267 = vsel %vm1088, %v2193, 0
      %2269 = vmatprep.subr.bf16.mxu0 %v2243
      %2270 = vmatpush1.bf16.msra.mxu0 %v2242
      %2271 = vmatprep.subr.bf16.mxu0 %v2246
      %2272 = vmatpush1.bf16.msra.mxu0 %v2245
      %2273 = vmatprep.subr.bf16.mxu0 %v2249
      %2274 = vmatpush1.bf16.msra.mxu0 %v2248
      %2275 = vmatprep.subr.bf16.mxu0 %v2252
      %2276 = vmatpush1.bf16.msra.mxu0 %v2251
      %2277 = vmatprep.subr.bf16.mxu0 0
      %2278 = vmatpush1.bf16.msra.mxu0 0
      %2279 = vmatprep.subr.bf16.mxu0 0
      %2280 = vmatpush1.bf16.msra.mxu0 0
      %2281 = vmatprep.subr.bf16.mxu0 0
      %2282 = vmatpush1.bf16.msra.mxu0 0
      %2283 = vmatprep.subr.bf16.mxu0 0
      %2284 = vmatpush1.bf16.msra.mxu0 0
      %2285 = vmatprep.subr.bf16.mxu0 0
      %2286 = vmatpush1.bf16.msra.mxu0 0
      %2287 = vmatprep.subr.bf16.mxu0 0
      %2288 = vmatpush1.bf16.msra.mxu0 0
      %2289 = vmatprep.subr.bf16.mxu0 0
      %2290 = vmatpush1.bf16.msra.mxu0 0
      %2291 = vmatprep.subr.bf16.mxu0 0
      %2292 = vmatpush1.bf16.msra.mxu0 0
      %2293 = vmatprep.subr.bf16.mxu0 0
      %2294 = vmatpush1.bf16.msra.mxu0 0
      %2295 = vmatprep.subr.bf16.mxu0 0
      %2296 = vmatpush1.bf16.msra.mxu0 0
      %2297 = vmatprep.subr.bf16.mxu0 0
      %2298 = vmatpush1.bf16.msra.mxu0 0
      %2299 = vmatprep.subr.bf16.mxu0 0
      %2300 = vmatpush1.bf16.msra.mxu0 0
      %2301 = vmatprep.mubr.bf16.mxu0 0
      %2302 = vmatmul.mubr.bf16.gmra.mrb[0].mxu0 %v2267
      %v2303 = vpop.f32.mrb[0].mxu0
      %v2304 = vadd.f32 %v324, %v2303
      %v2305 = vpop.f32.mrb[0].mxu0
      %v2306 = vadd.f32 %v324, %v2305
      %v2307 = vpop.f32.mrb[0].mxu0
      %v2308 = vpop.f32.mrb[0].mxu0
      %2309 = vdwg.mxu0
      %2310 = vmatprep.subr.bf16.mxu0 0
      %2311 = vmatpush1.bf16.msra.mxu0 %v2244
      %2312 = vmatprep.subr.bf16.mxu0 0
      %2313 = vmatpush1.bf16.msra.mxu0 %v2247
      %2314 = vmatprep.subr.bf16.mxu0 0
      %2315 = vmatpush1.bf16.msra.mxu0 %v2250
      %2316 = vmatprep.subr.bf16.mxu0 0
      %2317 = vmatpush1.bf16.msra.mxu0 %v2253
      %2318 = vmatprep.subr.bf16.mxu0 0
      %2319 = vmatpush1.bf16.msra.mxu0 0
      %2320 = vmatprep.subr.bf16.mxu0 0
      %2321 = vmatpush1.bf16.msra.mxu0 0
      %2322 = vmatprep.subr.bf16.mxu0 0
      %2323 = vmatpush1.bf16.msra.mxu0 0
      %2324 = vmatprep.subr.bf16.mxu0 0
      %2325 = vmatpush1.bf16.msra.mxu0 0
      %2326 = vmatprep.subr.bf16.mxu0 0
      %2327 = vmatpush1.bf16.msra.mxu0 0
      %2328 = vmatprep.subr.bf16.mxu0 0
      %2329 = vmatpush1.bf16.msra.mxu0 0
      %2330 = vmatprep.subr.bf16.mxu0 0
      %2331 = vmatpush1.bf16.msra.mxu0 0
      %2332 = vmatprep.subr.bf16.mxu0 0
      %2333 = vmatpush1.bf16.msra.mxu0 0
      %2334 = vmatprep.subr.bf16.mxu0 0
      %2335 = vmatpush1.bf16.msra.mxu0 0
      %2336 = vmatprep.subr.bf16.mxu0 0
      %2337 = vmatpush1.bf16.msra.mxu0 0
      %2338 = vmatprep.subr.bf16.mxu0 0
      %2339 = vmatpush1.bf16.msra.mxu0 0
      %2340 = vmatprep.subr.bf16.mxu0 0
      %2341 = vmatpush1.bf16.msra.mxu0 0
      %2342 = vmatprep.mubr.bf16.mxu0 0
      %2343 = vmatmul.mubr.bf16.gmra.mrb[0].mxu0 %v2267
      %v2344 = vpop.f32.mrb[0].mxu0
      %v2345 = vadd.f32 %v324, %v2344
      %v2346 = vpop.f32.mrb[0].mxu0
      %v2347 = vpop.f32.mrb[0].mxu0
      %v2348 = vpop.f32.mrb[0].mxu0
      %2349 = vdwg.mxu0
      %v2350 = vmul.f32 %v2304, %v520
      %v2351 = vmul.f32 %v2306, %v524
      %v2352 = vmul.f32 %v2345, %v528
      %v2353 = vpack.c.bf16 %v2350, %v2350
      %v2354 = vpack.c.bf16 %v2351, %v2351
      %v2355 = vpack.c.bf16 %v2352, %v2352
      %v2359 = vunpack.c.l.b16 %v2353
      %v2360 = vunpack.c.l.b16 %v2354
      %v2361 = vunpack.c.l.b16 %v2355
      %v2362 = vpack.c.b16 %v2360, %v2359
      %v2363 = vpack.c.b16 %v2361, %v2361
      %s2366 = scalar_lea.vmem %s305, 24
      %2367 = vst [vmem:[%s2366] sm:$0xff] %v2362
      %2368 = vst.msk [vmem:[%s2366 + $0x8] sm:$0xf] %vm1981, %v2363
      %v2369 = vld [vmem:[#allocation6 + $0x8] sm:$0xff]
      %v2370 = vld [vmem:[#allocation6 + $0x10] sm:$0xff]
      %v2371 = vld [vmem:[#allocation6 + $0x18] sm:$0xff]
      %v2372 = vld [vmem:[#allocation6 + $0x28] sm:$0xff]
      %v2373 = vld [vmem:[#allocation6 + $0x30] sm:$0xff]
      %v2374 = vld [vmem:[#allocation6 + $0x38] sm:$0xff]
      %v2375 = vld [vmem:[#allocation6 + $0x48] sm:$0xff]
      %v2376 = vld [vmem:[#allocation6 + $0x50] sm:$0xff]
      %v2377 = vld [vmem:[#allocation6 + $0x58] sm:$0xff]
      %v2378 = vld [vmem:[#allocation6 + $0x68] sm:$0xff]
      %v2379 = vld [vmem:[#allocation6 + $0x70] sm:$0xff]
      %v2380 = vld [vmem:[#allocation6 + $0x78] sm:$0xff]
      %s2381 = scalar_lea.vmem %s5, 12
      %v2382 = vld [vmem:[%s2381] sm:$0xf]
      %v2384 = vsel %vm1088, %v2382, 0
      %2386 = vmatprep.subr.bf16.mxu0 %v2370
      %2387 = vmatpush1.bf16.msra.mxu0 %v2369
      %2388 = vmatprep.subr.bf16.mxu0 %v2373
      %2389 = vmatpush1.bf16.msra.mxu0 %v2372
      %2390 = vmatprep.subr.bf16.mxu0 %v2376
      %2391 = vmatpush1.bf16.msra.mxu0 %v2375
      %2392 = vmatprep.subr.bf16.mxu0 %v2379
      %2393 = vmatpush1.bf16.msra.mxu0 %v2378
      %2394 = vmatprep.subr.bf16.mxu0 0
      %2395 = vmatpush1.bf16.msra.mxu0 0
      %2396 = vmatprep.subr.bf16.mxu0 0
      %2397 = vmatpush1.bf16.msra.mxu0 0
      %2398 = vmatprep.subr.bf16.mxu0 0
      %2399 = vmatpush1.bf16.msra.mxu0 0
      %2400 = vmatprep.subr.bf16.mxu0 0
      %2401 = vmatpush1.bf16.msra.mxu0 0
      %2402 = vmatprep.subr.bf16.mxu0 0
      %2403 = vmatpush1.bf16.msra.mxu0 0
      %2404 = vmatprep.subr.bf16.mxu0 0
      %2405 = vmatpush1.bf16.msra.mxu0 0
      %2406 = vmatprep.subr.bf16.mxu0 0
      %2407 = vmatpush1.bf16.msra.mxu0 0
      %2408 = vmatprep.subr.bf16.mxu0 0
      %2409 = vmatpush1.bf16.msra.mxu0 0
      %2410 = vmatprep.subr.bf16.mxu0 0
      %2411 = vmatpush1.bf16.msra.mxu0 0
      %2412 = vmatprep.subr.bf16.mxu0 0
      %2413 = vmatpush1.bf16.msra.mxu0 0
      %2414 = vmatprep.subr.bf16.mxu0 0
      %2415 = vmatpush1.bf16.msra.mxu0 0
      %2416 = vmatprep.subr.bf16.mxu0 0
      %2417 = vmatpush1.bf16.msra.mxu0 0
      %2418 = vmatprep.mubr.bf16.mxu0 0
      %2419 = vmatmul.mubr.bf16.gmra.mrb[0].mxu0 %v2384
      %v2420 = vpop.f32.mrb[0].mxu0
      %v2421 = vadd.f32 %v324, %v2420
      %v2422 = vpop.f32.mrb[0].mxu0
      %v2423 = vadd.f32 %v324, %v2422
      %v2424 = vpop.f32.mrb[0].mxu0
      %v2425 = vpop.f32.mrb[0].mxu0
      %2426 = vdwg.mxu0
      %2427 = vmatprep.subr.bf16.mxu0 0
      %2428 = vmatpush1.bf16.msra.mxu0 %v2371
      %2429 = vmatprep.subr.bf16.mxu0 0
      %2430 = vmatpush1.bf16.msra.mxu0 %v2374
      %2431 = vmatprep.subr.bf16.mxu0 0
      %2432 = vmatpush1.bf16.msra.mxu0 %v2377
      %2433 = vmatprep.subr.bf16.mxu0 0
      %2434 = vmatpush1.bf16.msra.mxu0 %v2380
      %2435 = vmatprep.subr.bf16.mxu0 0
      %2436 = vmatpush1.bf16.msra.mxu0 0
      %2437 = vmatprep.subr.bf16.mxu0 0
      %2438 = vmatpush1.bf16.msra.mxu0 0
      %2439 = vmatprep.subr.bf16.mxu0 0
      %2440 = vmatpush1.bf16.msra.mxu0 0
      %2441 = vmatprep.subr.bf16.mxu0 0
      %2442 = vmatpush1.bf16.msra.mxu0 0
      %2443 = vmatprep.subr.bf16.mxu0 0
      %2444 = vmatpush1.bf16.msra.mxu0 0
      %2445 = vmatprep.subr.bf16.mxu0 0
      %2446 = vmatpush1.bf16.msra.mxu0 0
      %2447 = vmatprep.subr.bf16.mxu0 0
      %2448 = vmatpush1.bf16.msra.mxu0 0
      %2449 = vmatprep.subr.bf16.mxu0 0
      %2450 = vmatpush1.bf16.msra.mxu0 0
      %2451 = vmatprep.subr.bf16.mxu0 0
      %2452 = vmatpush1.bf16.msra.mxu0 0
      %2453 = vmatprep.subr.bf16.mxu0 0
      %2454 = vmatpush1.bf16.msra.mxu0 0
      %2455 = vmatprep.subr.bf16.mxu0 0
      %2456 = vmatpush1.bf16.msra.mxu0 0
      %2457 = vmatprep.subr.bf16.mxu0 0
      %2458 = vmatpush1.bf16.msra.mxu0 0
      %2459 = vmatprep.mubr.bf16.mxu0 0
      %2460 = vmatmul.mubr.bf16.gmra.mrb[0].mxu0 %v2384
      %v2461 = vpop.f32.mrb[0].mxu0
      %v2462 = vadd.f32 %v324, %v2461
      %v2463 = vpop.f32.mrb[0].mxu0
      %v2464 = vpop.f32.mrb[0].mxu0
      %v2465 = vpop.f32.mrb[0].mxu0
      %2466 = vdwg.mxu0
      %v2467 = vmul.f32 %v2421, %v520
      %v2468 = vmul.f32 %v2423, %v524
      %v2469 = vmul.f32 %v2462, %v528
      %v2470 = vpack.c.bf16 %v2467, %v2467
      %v2471 = vpack.c.bf16 %v2468, %v2468
      %v2472 = vpack.c.bf16 %v2469, %v2469
      %v2476 = vunpack.c.l.b16 %v2470
      %v2477 = vunpack.c.l.b16 %v2471
      %v2478 = vunpack.c.l.b16 %v2472
      %v2479 = vpack.c.b16 %v2477, %v2476
      %v2480 = vpack.c.b16 %v2478, %v2478
      %s2483 = scalar_lea.vmem %s305, 36
      %2484 = vst [vmem:[%s2483] sm:$0xff] %v2479
      %2485 = vst.msk [vmem:[%s2483 + $0x8] sm:$0xf] %vm1981, %v2480
      %p2486 = scmp.lt.s32.totalorder %s19, 1
      %s2487 = scalar_select %p2486, %s19, 1
      %s2488 = smul.addr %s2487, 12
      %s2489 = smul.addr %s2488, 4
      %s2490 = scalar_lea.vmem %s8, %s2489
      // Predicated region
      $region53: #{unet_block_forward.1} parent=51 // pred_check
        %p2491 = pneg %p210
      $region54: #{unet_block_forward.1} parent=51 // pred_check_branch
        %2493 = sbr.rel (%p2491) target = $region56
      $region55: #{unet_block_forward.1} parent=51 // pred_region
        _
      $region56: #{unet_block_forward.1} parent=51 // pred_fallthru
        _
    $region52: #{unet_block_forward.1} parent=5 // pred_fallthru
      _
    %p2494 = scmp.le.s32.totalorder 2, %s14
    // Predicated region
    $region57: #{unet_block_forward.1} parent=5 // pred_check
      %p2495 = pneg %p2494
    $region58: #{unet_block_forward.1} parent=5 // pred_check_branch
      %2497 = sbr.rel (%p2495) target = $region60
    $region59: #{unet_block_forward.1} parent=5 // pred_region
      %s2498 = ssub.s32 %s14, 2
      // Predicated region
      $region61: #{unet_block_forward.1} parent=59 // pred_check
        %p2499 = pneg %p216
      $region62: #{unet_block_forward.1} parent=59 // pred_check_branch
        %2501 = sbr.rel (%p2499) target = $region64
      $region63: #{unet_block_forward.1} parent=59 // pred_region
        %p2502 = scmp.lt.s32.totalorder %s20, 1
        %s2503 = scalar_select %p2502, %s20, 1
        %s2504 = smul.addr %s2503, 12
        %s2505 = smul.addr %s2504, 4
        %s2506 = scalar_lea.vmem %s8, %s2505
      $region64: #{unet_block_forward.1} parent=59 // pred_fallthru
        _
    $region60: #{unet_block_forward.1} parent=5 // pred_fallthru
      _
  $region6: #{unet_block_forward.1} parent=0 // loop_footer
    %s18 = sadd.s32 1, %s14
  $region7: #{unet_block_forward.1} parent=0 // loop_footer_branch
    %13 = sbr.rel target = $region3
  $region8: #{unet_block_forward.1} parent=0 // loop_exit
    _

</llo_original>
